<compile_context>
chip_gen: v5e
topology: v5e:2x2
jax: 0.10.0
libtpu: 0.0.40
codegen_flags: <defaults>
</compile_context>

<pallas_src>
import numpy as np
import jax
import jax.numpy as jnp
from jax.experimental import pallas as pl
from jax.experimental.pallas import tpu as pltpu

F32_EPS = float(jnp.finfo(jnp.float32).eps)   # torch.finfo(torch.float32).eps
OBS_QRANGE = 255.0                            # observer dtype quint8: quant_max - quant_min
QMIN, QMAX = -128.0, 127.0                    # torch.quantize_per_channel dtype qint8
AVG_CONST = 0.01                              # observer averaging_constant default
KH = KW = 3
MAX_SUBLANES = 8                              # pack images until the sublane dim is full


def _boundary_masks(H, W):
    """(3, 3, 1, H*W) f32: masks[kh, kw, 0, h*W + w] == 1 iff tap (kh, kw)
    reads a valid (non-zero-padding) input pixel for output position (h, w)."""
    h = np.arange(H)[:, None]
    w = np.arange(W)[None, :]
    masks = np.zeros((KH, KW, 1, H * W), np.float32)
    for kh in range(KH):
        for kw in range(KW):
            dh, dw = kh - 1, kw - 1
            ok = (h + dh >= 0) & (h + dh < H) & (w + dw >= 0) & (w + dw < W)
            masks[kh, kw, 0] = ok.reshape(H * W).astype(np.float32)
    return jnp.asarray(masks)


def _make_fused_kernel(H, W, C, NB):
    HW = H * W
    NBC = NB * C

    def observer_scale(mn, mx):
        # MovingAveragePerChannelMinMaxObserver.calculate_qparams
        # (per_channel_affine, quint8 -> range 255); zero_point is forced to 0
        # by the module, so only the scale matters.
        min_neg = jnp.minimum(mn, 0.0)
        max_pos = jnp.maximum(mx, 0.0)
        return jnp.maximum((max_pos - min_neg) / OBS_QRANGE, F32_EPS)

    def per_image_minmax(y):
        # y: (NB*C, HW).  Lane-reduce once, then tiny sublane reductions per
        # packed image (observer channel == batch element).
        rmin = jnp.min(y, axis=1, keepdims=True)     # (NBC, 1)
        rmax = jnp.max(y, axis=1, keepdims=True)
        mins = [jnp.min(rmin[b * C:(b + 1) * C]) for b in range(NB)]
        maxs = [jnp.max(rmax[b * C:(b + 1) * C]) for b in range(NB)]
        return mins, maxs

    def scale_column(scales):
        # Per-image scalar scales -> (NB*C, 1) column broadcastable over lanes.
        cols = [jnp.broadcast_to(jnp.reshape(s, (1, 1)), (C, 1)) for s in scales]
        return cols[0] if NB == 1 else jnp.concatenate(cols, axis=0)

    def fake_quant(x, scale_col):
        # torch.quantize_per_channel(qint8, zero_point=0).dequantize()
        # jnp.round == round-half-to-even == torch's quantize rounding.
        q = jnp.clip(jnp.round(x / scale_col), QMIN, QMAX)
        return q * scale_col

    def kernel(x_ref, m_ref, w1_ref, b1_ref, w2_ref, b2_ref, w3_ref, b3_ref,
               y_ref):
        x = x_ref[...]                                  # (NB*C, HW), lane-dense

        def conv3x3(xc, w_ref, b_ref):
            # 3x3 "same" conv (zero padding) on NB packed flattened images:
            # 9 static lane rotations + boundary masks + block-diagonal
            # (NB*C, NB*C) MXU matmuls accumulated in f32.
            acc = jnp.zeros((NBC, HW), jnp.float32)
            for kh in range(KH):
                for kw in range(KW):
                    dh, dw = kh - 1, kw - 1
                    s = dh * W + dw                     # flat source offset
                    tap = xc if s == 0 else pltpu.roll(xc, (-s) % HW, 1)
                    if not (dh == 0 and dw == 0):
                        tap = tap * m_ref[kh, kw]       # (1, HW) broadcast
                    acc = acc + jnp.dot(w_ref[kh, kw], tap,
                                        preferred_element_type=jnp.float32)
            return acc + b_ref[...]                     # bias (NB*C, 1) broadcast

        # layer 1 + observer (first call: direct per-channel min/max assignment)
        y1 = conv3x3(x, w1_ref, b1_ref)
        mins, maxs = per_image_minmax(y1)
        scales1 = [observer_scale(mn, mx) for mn, mx in zip(mins, maxs)]

        # layer 2 on fake-quantized y1 + observer (moving-average update)
        y2 = conv3x3(fake_quant(y1, scale_column(scales1)), w2_ref, b2_ref)
        mins2, maxs2 = per_image_minmax(y2)
        mins = [mn + AVG_CONST * (m2 - mn) for mn, m2 in zip(mins, mins2)]
        maxs = [mx + AVG_CONST * (m2 - mx) for mx, m2 in zip(maxs, maxs2)]
        scales2 = [observer_scale(mn, mx) for mn, mx in zip(mins, maxs)]

        # layer 3 on fake-quantized y2; its raw output is the model output
        y_ref[...] = conv3x3(fake_quant(y2, scale_column(scales2)),
                             w3_ref, b3_ref)

    return kernel


def quantiseze_forward(x_nchw, params):
    """Forward pass of `quantiseze_model` with three Conv2d(C->C, 3, padding=1).

    Weights are stored as (kh, kw, Cout, Cin); biases as (Cout,)."""
    N, C, H, W = x_nchw.shape
    HW = H * W
    (w1, b1), (w2, b2), (w3, b3) = params

    # Pack NB images per grid step so the sublane dim (NB*C) fills a vreg.
    nb_cap = max(1, MAX_SUBLANES // C)
    NB = 1
    for cand in range(min(N, nb_cap), 0, -1):
        if N % cand == 0:
            NB = cand
            break
    G = N // NB
    NBC = NB * C

    x_flat = x_nchw.reshape(N * C, HW)                  # contiguous -> free
    masks = _boundary_masks(H, W)

    # Block-diagonal per-tap weights (one MXU matmul covers all packed images)
    # and tiled biases; built once outside the kernel (tiny constants).
    eye = jnp.eye(NB, dtype=jnp.float32)

    def blockdiag(w):                                   # (KH,KW,C,C)->(KH,KW,NBC,NBC)
        return jnp.einsum('ab,klij->klaibj', eye, w).reshape(KH, KW, NBC, NBC)

    def tile_bias(b):
        return jnp.tile(b, NB).reshape(NBC, 1)

    w1d, w2d, w3d = blockdiag(w1), blockdiag(w2), blockdiag(w3)
    b1t, b2t, b3t = tile_bias(b1), tile_bias(b2), tile_bias(b3)

    wspec = pl.BlockSpec((KH, KW, NBC, NBC), lambda g: (0, 0, 0, 0))
    bspec = pl.BlockSpec((NBC, 1), lambda g: (0, 0))

    y = pl.pallas_call(
        _make_fused_kernel(H, W, C, NB),
        out_shape=jax.ShapeDtypeStruct((N * C, HW), jnp.float32),
        grid=(G,),
        in_specs=[
            pl.BlockSpec((NBC, HW), lambda g: (g, 0)),          # NB packed images
            pl.BlockSpec((KH, KW, 1, HW), lambda g: (0, 0, 0, 0)),  # pad masks
            wspec, bspec,                                        # layer 1
            wspec, bspec,                                        # layer 2
            wspec, bspec,                                        # layer 3
        ],
        out_specs=pl.BlockSpec((NBC, HW), lambda g: (g, 0)),
        compiler_params=pltpu.CompilerParams(
            dimension_semantics=("parallel",)),
    )(x_flat, masks, w1d, b1t, w2d, b2t, w3d, b3t)
    return y.reshape(N, C, H, W)


def _init_conv(key, cin, cout, k=3):
    """Conv2d default init (uniform +/- 1/sqrt(fan_in)); weight (k, k, cout, cin)."""
    kw_key, kb_key = jax.random.split(key)
    bound = 1.0 / float(np.sqrt(cin * k * k))
    w = jax.random.uniform(kw_key, (k, k, cout, cin), jnp.float32, -bound, bound)
    b = jax.random.uniform(kb_key, (cout,), jnp.float32, -bound, bound)
    return w, b


if __name__ == "__main__":
    key = jax.random.PRNGKey(0)
    kx, k1, k2, k3 = jax.random.split(key, 4)
    N, C, H, W = 2, 4, 16, 16
    x = jax.random.normal(kx, (N, C, H, W), dtype=jnp.float32)
    params = (_init_conv(k1, C, C), _init_conv(k2, C, C), _init_conv(k3, C, C))

    # TODO(synk): the observer's min_val/max_val buffers do not persist across
    # forward calls here; a single forward's observer behaviour is reproduced.
    out = jax.jit(quantiseze_forward)(x, params)
    jax.block_until_ready(out)
    assert out.shape == (N, C, H, W) and out.dtype == jnp.float32
    print("KERNEL_OK")
</pallas_src>

<mosaic_0001>
module attributes {stable_mosaic.version = 11 : i64} {
  func.func @kernel(%arg0: i32, %arg1: memref<8x256xf32, #tpu.memory_space<vmem>>, %arg2: memref<3x3x1x256xf32, #tpu.memory_space<vmem>>, %arg3: memref<3x3x8x8xf32, #tpu.memory_space<vmem>>, %arg4: memref<8x1xf32, #tpu.memory_space<vmem>>, %arg5: memref<3x3x8x8xf32, #tpu.memory_space<vmem>>, %arg6: memref<8x1xf32, #tpu.memory_space<vmem>>, %arg7: memref<3x3x8x8xf32, #tpu.memory_space<vmem>>, %arg8: memref<8x1xf32, #tpu.memory_space<vmem>>, %arg9: memref<8x256xf32, #tpu.memory_space<vmem>>) attributes {dimension_semantics = [#tpu.dimension_semantics<parallel>], iteration_bounds = array<i64: 1>, scalar_prefetch = 0 : i64, scratch_operands = 0 : i64, tpu.core_type = #tpu.core_type<tc>, window_params = [{transform_indices = @transform_0, window_bounds = array<i64: 8, 256>}, {pipeline_mode = #tpu.pipeline_mode<synchronous>, transform_indices = @transform_1, window_bounds = array<i64: 3, 3, 1, 256>}, {pipeline_mode = #tpu.pipeline_mode<synchronous>, transform_indices = @transform_2, window_bounds = array<i64: 3, 3, 8, 8>}, {pipeline_mode = #tpu.pipeline_mode<synchronous>, transform_indices = @transform_3, window_bounds = array<i64: 8, 1>}, {pipeline_mode = #tpu.pipeline_mode<synchronous>, transform_indices = @transform_4, window_bounds = array<i64: 3, 3, 8, 8>}, {pipeline_mode = #tpu.pipeline_mode<synchronous>, transform_indices = @transform_5, window_bounds = array<i64: 8, 1>}, {pipeline_mode = #tpu.pipeline_mode<synchronous>, transform_indices = @transform_6, window_bounds = array<i64: 3, 3, 8, 8>}, {pipeline_mode = #tpu.pipeline_mode<synchronous>, transform_indices = @transform_7, window_bounds = array<i64: 8, 1>}, {transform_indices = @transform_8, window_bounds = array<i64: 8, 256>}]} {
    %c0 = arith.constant 0 : index
    %c0_0 = arith.constant 0 : index
    %0 = vector.load %arg1[%c0, %c0_0] : memref<8x256xf32, #tpu.memory_space<vmem>>, vector<8x256xf32>
    %cst = arith.constant 0.000000e+00 : f32
    %1 = vector.broadcast %cst : f32 to vector<8x256xf32>
    %c17_i32 = arith.constant 17 : i32
    %2 = tpu.dynamic_rotate %0 by %c17_i32 dim 1 : vector<8x256xf32>, i32 -> vector<8x256xf32>
    %c0_1 = arith.constant 0 : index
    %c0_2 = arith.constant 0 : index
    %c0_3 = arith.constant 0 : index
    %c0_4 = arith.constant 0 : index
    %3 = vector.load %arg2[%c0_1, %c0_2, %c0_3, %c0_4] : memref<3x3x1x256xf32, #tpu.memory_space<vmem>>, vector<1x1x1x256xf32>
    %4 = vector.shape_cast %3 : vector<1x1x1x256xf32> to vector<1x256xf32>
    %5 = vector.broadcast %4 : vector<1x256xf32> to vector<8x256xf32>
    %6 = arith.mulf %2, %5 : vector<8x256xf32>
    %c0_5 = arith.constant 0 : index
    %c0_6 = arith.constant 0 : index
    %c0_7 = arith.constant 0 : index
    %c0_8 = arith.constant 0 : index
    %7 = vector.load %arg3[%c0_5, %c0_6, %c0_7, %c0_8] : memref<3x3x8x8xf32, #tpu.memory_space<vmem>>, vector<1x1x8x8xf32>
    %8 = vector.shape_cast %7 : vector<1x1x8x8xf32> to vector<8x8xf32>
    %cst_9 = arith.constant dense<0.000000e+00> : vector<8x256xf32>
    %9 = tpu.matmul %8, %6, %cst_9 {dimension_numbers = #tpu.dot_dimension_numbers<[1], [0], [0], [1], [0, 0, 1, 1], [], []>} : vector<8x8xf32>, vector<8x256xf32>, vector<8x256xf32> -> vector<8x256xf32>
    %10 = arith.addf %1, %9 : vector<8x256xf32>
    %c16_i32 = arith.constant 16 : i32
    %11 = tpu.dynamic_rotate %0 by %c16_i32 dim 1 : vector<8x256xf32>, i32 -> vector<8x256xf32>
    %c0_10 = arith.constant 0 : index
    %c1 = arith.constant 1 : index
    %c0_11 = arith.constant 0 : index
    %c0_12 = arith.constant 0 : index
    %12 = vector.load %arg2[%c0_10, %c1, %c0_11, %c0_12] : memref<3x3x1x256xf32, #tpu.memory_space<vmem>>, vector<1x1x1x256xf32>
    %13 = vector.shape_cast %12 : vector<1x1x1x256xf32> to vector<1x256xf32>
    %14 = vector.broadcast %13 : vector<1x256xf32> to vector<8x256xf32>
    %15 = arith.mulf %11, %14 : vector<8x256xf32>
    %c0_13 = arith.constant 0 : index
    %c1_14 = arith.constant 1 : index
    %c0_15 = arith.constant 0 : index
    %c0_16 = arith.constant 0 : index
    %16 = vector.load %arg3[%c0_13, %c1_14, %c0_15, %c0_16] : memref<3x3x8x8xf32, #tpu.memory_space<vmem>>, vector<1x1x8x8xf32>
    %17 = vector.shape_cast %16 : vector<1x1x8x8xf32> to vector<8x8xf32>
    %cst_17 = arith.constant dense<0.000000e+00> : vector<8x256xf32>
    %18 = tpu.matmul %17, %15, %cst_17 {dimension_numbers = #tpu.dot_dimension_numbers<[1], [0], [0], [1], [0, 0, 1, 1], [], []>} : vector<8x8xf32>, vector<8x256xf32>, vector<8x256xf32> -> vector<8x256xf32>
    %19 = arith.addf %10, %18 : vector<8x256xf32>
    %c15_i32 = arith.constant 15 : i32
    %20 = tpu.dynamic_rotate %0 by %c15_i32 dim 1 : vector<8x256xf32>, i32 -> vector<8x256xf32>
    %c0_18 = arith.constant 0 : index
    %c2 = arith.constant 2 : index
    %c0_19 = arith.constant 0 : index
    %c0_20 = arith.constant 0 : index
    %21 = vector.load %arg2[%c0_18, %c2, %c0_19, %c0_20] : memref<3x3x1x256xf32, #tpu.memory_space<vmem>>, vector<1x1x1x256xf32>
    %22 = vector.shape_cast %21 : vector<1x1x1x256xf32> to vector<1x256xf32>
    %23 = vector.broadcast %22 : vector<1x256xf32> to vector<8x256xf32>
    %24 = arith.mulf %20, %23 : vector<8x256xf32>
    %c0_21 = arith.constant 0 : index
    %c2_22 = arith.constant 2 : index
    %c0_23 = arith.constant 0 : index
    %c0_24 = arith.constant 0 : index
    %25 = vector.load %arg3[%c0_21, %c2_22, %c0_23, %c0_24] : memref<3x3x8x8xf32, #tpu.memory_space<vmem>>, vector<1x1x8x8xf32>
    %26 = vector.shape_cast %25 : vector<1x1x8x8xf32> to vector<8x8xf32>
    %cst_25 = arith.constant dense<0.000000e+00> : vector<8x256xf32>
    %27 = tpu.matmul %26, %24, %cst_25 {dimension_numbers = #tpu.dot_dimension_numbers<[1], [0], [0], [1], [0, 0, 1, 1], [], []>} : vector<8x8xf32>, vector<8x256xf32>, vector<8x256xf32> -> vector<8x256xf32>
    %28 = arith.addf %19, %27 : vector<8x256xf32>
    %c1_i32 = arith.constant 1 : i32
    %29 = tpu.dynamic_rotate %0 by %c1_i32 dim 1 : vector<8x256xf32>, i32 -> vector<8x256xf32>
    %c1_26 = arith.constant 1 : index
    %c0_27 = arith.constant 0 : index
    %c0_28 = arith.constant 0 : index
    %c0_29 = arith.constant 0 : index
    %30 = vector.load %arg2[%c1_26, %c0_27, %c0_28, %c0_29] : memref<3x3x1x256xf32, #tpu.memory_space<vmem>>, vector<1x1x1x256xf32>
    %31 = vector.shape_cast %30 : vector<1x1x1x256xf32> to vector<1x256xf32>
    %32 = vector.broadcast %31 : vector<1x256xf32> to vector<8x256xf32>
    %33 = arith.mulf %29, %32 : vector<8x256xf32>
    %c1_30 = arith.constant 1 : index
    %c0_31 = arith.constant 0 : index
    %c0_32 = arith.constant 0 : index
    %c0_33 = arith.constant 0 : index
    %34 = vector.load %arg3[%c1_30, %c0_31, %c0_32, %c0_33] : memref<3x3x8x8xf32, #tpu.memory_space<vmem>>, vector<1x1x8x8xf32>
    %35 = vector.shape_cast %34 : vector<1x1x8x8xf32> to vector<8x8xf32>
    %cst_34 = arith.constant dense<0.000000e+00> : vector<8x256xf32>
    %36 = tpu.matmul %35, %33, %cst_34 {dimension_numbers = #tpu.dot_dimension_numbers<[1], [0], [0], [1], [0, 0, 1, 1], [], []>} : vector<8x8xf32>, vector<8x256xf32>, vector<8x256xf32> -> vector<8x256xf32>
    %37 = arith.addf %28, %36 : vector<8x256xf32>
    %c1_35 = arith.constant 1 : index
    %c1_36 = arith.constant 1 : index
    %c0_37 = arith.constant 0 : index
    %c0_38 = arith.constant 0 : index
    %38 = vector.load %arg3[%c1_35, %c1_36, %c0_37, %c0_38] : memref<3x3x8x8xf32, #tpu.memory_space<vmem>>, vector<1x1x8x8xf32>
    %39 = vector.shape_cast %38 : vector<1x1x8x8xf32> to vector<8x8xf32>
    %cst_39 = arith.constant dense<0.000000e+00> : vector<8x256xf32>
    %40 = tpu.matmul %39, %0, %cst_39 {dimension_numbers = #tpu.dot_dimension_numbers<[1], [0], [0], [1], [0, 0, 1, 1], [], []>} : vector<8x8xf32>, vector<8x256xf32>, vector<8x256xf32> -> vector<8x256xf32>
    %41 = arith.addf %37, %40 : vector<8x256xf32>
    %c255_i32 = arith.constant 255 : i32
    %42 = tpu.dynamic_rotate %0 by %c255_i32 dim 1 : vector<8x256xf32>, i32 -> vector<8x256xf32>
    %c1_40 = arith.constant 1 : index
    %c2_41 = arith.constant 2 : index
    %c0_42 = arith.constant 0 : index
    %c0_43 = arith.constant 0 : index
    %43 = vector.load %arg2[%c1_40, %c2_41, %c0_42, %c0_43] : memref<3x3x1x256xf32, #tpu.memory_space<vmem>>, vector<1x1x1x256xf32>
    %44 = vector.shape_cast %43 : vector<1x1x1x256xf32> to vector<1x256xf32>
    %45 = vector.broadcast %44 : vector<1x256xf32> to vector<8x256xf32>
    %46 = arith.mulf %42, %45 : vector<8x256xf32>
    %c1_44 = arith.constant 1 : index
    %c2_45 = arith.constant 2 : index
    %c0_46 = arith.constant 0 : index
    %c0_47 = arith.constant 0 : index
    %47 = vector.load %arg3[%c1_44, %c2_45, %c0_46, %c0_47] : memref<3x3x8x8xf32, #tpu.memory_space<vmem>>, vector<1x1x8x8xf32>
    %48 = vector.shape_cast %47 : vector<1x1x8x8xf32> to vector<8x8xf32>
    %cst_48 = arith.constant dense<0.000000e+00> : vector<8x256xf32>
    %49 = tpu.matmul %48, %46, %cst_48 {dimension_numbers = #tpu.dot_dimension_numbers<[1], [0], [0], [1], [0, 0, 1, 1], [], []>} : vector<8x8xf32>, vector<8x256xf32>, vector<8x256xf32> -> vector<8x256xf32>
    %50 = arith.addf %41, %49 : vector<8x256xf32>
    %c241_i32 = arith.constant 241 : i32
    %51 = tpu.dynamic_rotate %0 by %c241_i32 dim 1 : vector<8x256xf32>, i32 -> vector<8x256xf32>
    %c2_49 = arith.constant 2 : index
    %c0_50 = arith.constant 0 : index
    %c0_51 = arith.constant 0 : index
    %c0_52 = arith.constant 0 : index
    %52 = vector.load %arg2[%c2_49, %c0_50, %c0_51, %c0_52] : memref<3x3x1x256xf32, #tpu.memory_space<vmem>>, vector<1x1x1x256xf32>
    %53 = vector.shape_cast %52 : vector<1x1x1x256xf32> to vector<1x256xf32>
    %54 = vector.broadcast %53 : vector<1x256xf32> to vector<8x256xf32>
    %55 = arith.mulf %51, %54 : vector<8x256xf32>
    %c2_53 = arith.constant 2 : index
    %c0_54 = arith.constant 0 : index
    %c0_55 = arith.constant 0 : index
    %c0_56 = arith.constant 0 : index
    %56 = vector.load %arg3[%c2_53, %c0_54, %c0_55, %c0_56] : memref<3x3x8x8xf32, #tpu.memory_space<vmem>>, vector<1x1x8x8xf32>
    %57 = vector.shape_cast %56 : vector<1x1x8x8xf32> to vector<8x8xf32>
    %cst_57 = arith.constant dense<0.000000e+00> : vector<8x256xf32>
    %58 = tpu.matmul %57, %55, %cst_57 {dimension_numbers = #tpu.dot_dimension_numbers<[1], [0], [0], [1], [0, 0, 1, 1], [], []>} : vector<8x8xf32>, vector<8x256xf32>, vector<8x256xf32> -> vector<8x256xf32>
    %59 = arith.addf %50, %58 : vector<8x256xf32>
    %c240_i32 = arith.constant 240 : i32
    %60 = tpu.dynamic_rotate %0 by %c240_i32 dim 1 : vector<8x256xf32>, i32 -> vector<8x256xf32>
    %c2_58 = arith.constant 2 : index
    %c1_59 = arith.constant 1 : index
    %c0_60 = arith.constant 0 : index
    %c0_61 = arith.constant 0 : index
    %61 = vector.load %arg2[%c2_58, %c1_59, %c0_60, %c0_61] : memref<3x3x1x256xf32, #tpu.memory_space<vmem>>, vector<1x1x1x256xf32>
    %62 = vector.shape_cast %61 : vector<1x1x1x256xf32> to vector<1x256xf32>
    %63 = vector.broadcast %62 : vector<1x256xf32> to vector<8x256xf32>
    %64 = arith.mulf %60, %63 : vector<8x256xf32>
    %c2_62 = arith.constant 2 : index
    %c1_63 = arith.constant 1 : index
    %c0_64 = arith.constant 0 : index
    %c0_65 = arith.constant 0 : index
    %65 = vector.load %arg3[%c2_62, %c1_63, %c0_64, %c0_65] : memref<3x3x8x8xf32, #tpu.memory_space<vmem>>, vector<1x1x8x8xf32>
    %66 = vector.shape_cast %65 : vector<1x1x8x8xf32> to vector<8x8xf32>
    %cst_66 = arith.constant dense<0.000000e+00> : vector<8x256xf32>
    %67 = tpu.matmul %66, %64, %cst_66 {dimension_numbers = #tpu.dot_dimension_numbers<[1], [0], [0], [1], [0, 0, 1, 1], [], []>} : vector<8x8xf32>, vector<8x256xf32>, vector<8x256xf32> -> vector<8x256xf32>
    %68 = arith.addf %59, %67 : vector<8x256xf32>
    %c239_i32 = arith.constant 239 : i32
    %69 = tpu.dynamic_rotate %0 by %c239_i32 dim 1 : vector<8x256xf32>, i32 -> vector<8x256xf32>
    %c2_67 = arith.constant 2 : index
    %c2_68 = arith.constant 2 : index
    %c0_69 = arith.constant 0 : index
    %c0_70 = arith.constant 0 : index
    %70 = vector.load %arg2[%c2_67, %c2_68, %c0_69, %c0_70] : memref<3x3x1x256xf32, #tpu.memory_space<vmem>>, vector<1x1x1x256xf32>
    %71 = vector.shape_cast %70 : vector<1x1x1x256xf32> to vector<1x256xf32>
    %72 = vector.broadcast %71 : vector<1x256xf32> to vector<8x256xf32>
    %73 = arith.mulf %69, %72 : vector<8x256xf32>
    %c2_71 = arith.constant 2 : index
    %c2_72 = arith.constant 2 : index
    %c0_73 = arith.constant 0 : index
    %c0_74 = arith.constant 0 : index
    %74 = vector.load %arg3[%c2_71, %c2_72, %c0_73, %c0_74] : memref<3x3x8x8xf32, #tpu.memory_space<vmem>>, vector<1x1x8x8xf32>
    %75 = vector.shape_cast %74 : vector<1x1x8x8xf32> to vector<8x8xf32>
    %cst_75 = arith.constant dense<0.000000e+00> : vector<8x256xf32>
    %76 = tpu.matmul %75, %73, %cst_75 {dimension_numbers = #tpu.dot_dimension_numbers<[1], [0], [0], [1], [0, 0, 1, 1], [], []>} : vector<8x8xf32>, vector<8x256xf32>, vector<8x256xf32> -> vector<8x256xf32>
    %77 = arith.addf %68, %76 : vector<8x256xf32>
    %c0_76 = arith.constant 0 : index
    %c0_77 = arith.constant 0 : index
    %78 = vector.load %arg4[%c0_76, %c0_77] : memref<8x1xf32, #tpu.memory_space<vmem>>, vector<8x1xf32>
    %79 = vector.broadcast %78 : vector<8x1xf32> to vector<8x256xf32>
    %80 = arith.addf %77, %79 : vector<8x256xf32>
    %cst_78 = arith.constant dense<0x7F800000> : vector<8xf32>
    %81 = vector.multi_reduction <minimumf>, %80, %cst_78 [1] : vector<8x256xf32> to vector<8xf32>
    %82 = vector.shape_cast %81 : vector<8xf32> to vector<8x1xf32>
    %cst_79 = arith.constant dense<0xFF800000> : vector<8xf32>
    %83 = vector.multi_reduction <maximumf>, %80, %cst_79 [1] : vector<8x256xf32> to vector<8xf32>
    %84 = vector.shape_cast %83 : vector<8xf32> to vector<8x1xf32>
    %85 = vector.extract_strided_slice %82 {offsets = [0, 0], sizes = [4, 1], strides = [1, 1]} : vector<8x1xf32> to vector<4x1xf32>
    %86 = vector.shape_cast %85 : vector<4x1xf32> to vector<1x4x1xf32>
    %cst_80 = arith.constant dense<0x7F800000> : vector<1xf32>
    %87 = vector.multi_reduction <minimumf>, %86, %cst_80 [1, 2] : vector<1x4x1xf32> to vector<1xf32>
    %88 = vector.shape_cast %87 : vector<1xf32> to vector<1x1x1xf32>
    %89 = vector.extract %88[0, 0, 0] : f32 from vector<1x1x1xf32>
    %90 = vector.extract_strided_slice %82 {offsets = [4, 0], sizes = [4, 1], strides = [1, 1]} : vector<8x1xf32> to vector<4x1xf32>
    %91 = vector.shape_cast %90 : vector<4x1xf32> to vector<1x4x1xf32>
    %cst_81 = arith.constant dense<0x7F800000> : vector<1xf32>
    %92 = vector.multi_reduction <minimumf>, %91, %cst_81 [1, 2] : vector<1x4x1xf32> to vector<1xf32>
    %93 = vector.shape_cast %92 : vector<1xf32> to vector<1x1x1xf32>
    %94 = vector.extract %93[0, 0, 0] : f32 from vector<1x1x1xf32>
    %95 = vector.extract_strided_slice %84 {offsets = [0, 0], sizes = [4, 1], strides = [1, 1]} : vector<8x1xf32> to vector<4x1xf32>
    %96 = vector.shape_cast %95 : vector<4x1xf32> to vector<1x4x1xf32>
    %cst_82 = arith.constant dense<0xFF800000> : vector<1xf32>
    %97 = vector.multi_reduction <maximumf>, %96, %cst_82 [1, 2] : vector<1x4x1xf32> to vector<1xf32>
    %98 = vector.shape_cast %97 : vector<1xf32> to vector<1x1x1xf32>
    %99 = vector.extract %98[0, 0, 0] : f32 from vector<1x1x1xf32>
    %100 = vector.extract_strided_slice %84 {offsets = [4, 0], sizes = [4, 1], strides = [1, 1]} : vector<8x1xf32> to vector<4x1xf32>
    %101 = vector.shape_cast %100 : vector<4x1xf32> to vector<1x4x1xf32>
    %cst_83 = arith.constant dense<0xFF800000> : vector<1xf32>
    %102 = vector.multi_reduction <maximumf>, %101, %cst_83 [1, 2] : vector<1x4x1xf32> to vector<1xf32>
    %103 = vector.shape_cast %102 : vector<1xf32> to vector<1x1x1xf32>
    %104 = vector.extract %103[0, 0, 0] : f32 from vector<1x1x1xf32>
    %cst_84 = arith.constant 0.000000e+00 : f32
    %105 = arith.minimumf %89, %cst_84 : f32
    %cst_85 = arith.constant 0.000000e+00 : f32
    %106 = arith.maximumf %99, %cst_85 : f32
    %107 = arith.subf %106, %105 : f32
    %cst_86 = arith.constant 2.550000e+02 : f32
    %108 = arith.divf %107, %cst_86 : f32
    %cst_87 = arith.constant 1.1920929E-7 : f32
    %109 = arith.maximumf %108, %cst_87 : f32
    %cst_88 = arith.constant 0.000000e+00 : f32
    %110 = arith.minimumf %94, %cst_88 : f32
    %cst_89 = arith.constant 0.000000e+00 : f32
    %111 = arith.maximumf %104, %cst_89 : f32
    %112 = arith.subf %111, %110 : f32
    %cst_90 = arith.constant 2.550000e+02 : f32
    %113 = arith.divf %112, %cst_90 : f32
    %cst_91 = arith.constant 1.1920929E-7 : f32
    %114 = arith.maximumf %113, %cst_91 : f32
    %115 = vector.broadcast %109 : f32 to vector<1x1xf32>
    %116 = vector.shape_cast %115 : vector<1x1xf32> to vector<1x1xf32>
    %117 = vector.broadcast %116 : vector<1x1xf32> to vector<4x1xf32>
    %118 = vector.broadcast %114 : f32 to vector<1x1xf32>
    %119 = vector.shape_cast %118 : vector<1x1xf32> to vector<1x1xf32>
    %120 = vector.broadcast %119 : vector<1x1xf32> to vector<4x1xf32>
    %121 = tpu.concatenate %117, %120 in 0 : vector<4x1xf32>, vector<4x1xf32> -> vector<8x1xf32>
    %122 = vector.broadcast %121 : vector<8x1xf32> to vector<8x256xf32>
    %123 = arith.divf %80, %122 : vector<8x256xf32>
    %124 = math.roundeven %123 : vector<8x256xf32>
    %cst_92 = arith.constant -1.280000e+02 : f32
    %cst_93 = arith.constant 1.270000e+02 : f32
    %125 = vector.broadcast %cst_92 : f32 to vector<8x256xf32>
    %126 = arith.maximumf %125, %124 : vector<8x256xf32>
    %127 = vector.broadcast %cst_93 : f32 to vector<8x256xf32>
    %128 = arith.minimumf %127, %126 : vector<8x256xf32>
    %129 = vector.broadcast %121 : vector<8x1xf32> to vector<8x256xf32>
    %130 = arith.mulf %128, %129 : vector<8x256xf32>
    %cst_94 = arith.constant 0.000000e+00 : f32
    %131 = vector.broadcast %cst_94 : f32 to vector<8x256xf32>
    %c17_i32_95 = arith.constant 17 : i32
    %132 = tpu.dynamic_rotate %130 by %c17_i32_95 dim 1 : vector<8x256xf32>, i32 -> vector<8x256xf32>
    %c0_96 = arith.constant 0 : index
    %c0_97 = arith.constant 0 : index
    %c0_98 = arith.constant 0 : index
    %c0_99 = arith.constant 0 : index
    %133 = vector.load %arg2[%c0_96, %c0_97, %c0_98, %c0_99] : memref<3x3x1x256xf32, #tpu.memory_space<vmem>>, vector<1x1x1x256xf32>
    %134 = vector.shape_cast %133 : vector<1x1x1x256xf32> to vector<1x256xf32>
    %135 = vector.broadcast %134 : vector<1x256xf32> to vector<8x256xf32>
    %136 = arith.mulf %132, %135 : vector<8x256xf32>
    %c0_100 = arith.constant 0 : index
    %c0_101 = arith.constant 0 : index
    %c0_102 = arith.constant 0 : index
    %c0_103 = arith.constant 0 : index
    %137 = vector.load %arg5[%c0_100, %c0_101, %c0_102, %c0_103] : memref<3x3x8x8xf32, #tpu.memory_space<vmem>>, vector<1x1x8x8xf32>
    %138 = vector.shape_cast %137 : vector<1x1x8x8xf32> to vector<8x8xf32>
    %cst_104 = arith.constant dense<0.000000e+00> : vector<8x256xf32>
    %139 = tpu.matmul %138, %136, %cst_104 {dimension_numbers = #tpu.dot_dimension_numbers<[1], [0], [0], [1], [0, 0, 1, 1], [], []>} : vector<8x8xf32>, vector<8x256xf32>, vector<8x256xf32> -> vector<8x256xf32>
    %140 = arith.addf %131, %139 : vector<8x256xf32>
    %c16_i32_105 = arith.constant 16 : i32
    %141 = tpu.dynamic_rotate %130 by %c16_i32_105 dim 1 : vector<8x256xf32>, i32 -> vector<8x256xf32>
    %c0_106 = arith.constant 0 : index
    %c1_107 = arith.constant 1 : index
    %c0_108 = arith.constant 0 : index
    %c0_109 = arith.constant 0 : index
    %142 = vector.load %arg2[%c0_106, %c1_107, %c0_108, %c0_109] : memref<3x3x1x256xf32, #tpu.memory_space<vmem>>, vector<1x1x1x256xf32>
    %143 = vector.shape_cast %142 : vector<1x1x1x256xf32> to vector<1x256xf32>
    %144 = vector.broadcast %143 : vector<1x256xf32> to vector<8x256xf32>
    %145 = arith.mulf %141, %144 : vector<8x256xf32>
    %c0_110 = arith.constant 0 : index
    %c1_111 = arith.constant 1 : index
    %c0_112 = arith.constant 0 : index
    %c0_113 = arith.constant 0 : index
    %146 = vector.load %arg5[%c0_110, %c1_111, %c0_112, %c0_113] : memref<3x3x8x8xf32, #tpu.memory_space<vmem>>, vector<1x1x8x8xf32>
    %147 = vector.shape_cast %146 : vector<1x1x8x8xf32> to vector<8x8xf32>
    %cst_114 = arith.constant dense<0.000000e+00> : vector<8x256xf32>
    %148 = tpu.matmul %147, %145, %cst_114 {dimension_numbers = #tpu.dot_dimension_numbers<[1], [0], [0], [1], [0, 0, 1, 1], [], []>} : vector<8x8xf32>, vector<8x256xf32>, vector<8x256xf32> -> vector<8x256xf32>
    %149 = arith.addf %140, %148 : vector<8x256xf32>
    %c15_i32_115 = arith.constant 15 : i32
    %150 = tpu.dynamic_rotate %130 by %c15_i32_115 dim 1 : vector<8x256xf32>, i32 -> vector<8x256xf32>
    %c0_116 = arith.constant 0 : index
    %c2_117 = arith.constant 2 : index
    %c0_118 = arith.constant 0 : index
    %c0_119 = arith.constant 0 : index
    %151 = vector.load %arg2[%c0_116, %c2_117, %c0_118, %c0_119] : memref<3x3x1x256xf32, #tpu.memory_space<vmem>>, vector<1x1x1x256xf32>
    %152 = vector.shape_cast %151 : vector<1x1x1x256xf32> to vector<1x256xf32>
    %153 = vector.broadcast %152 : vector<1x256xf32> to vector<8x256xf32>
    %154 = arith.mulf %150, %153 : vector<8x256xf32>
    %c0_120 = arith.constant 0 : index
    %c2_121 = arith.constant 2 : index
    %c0_122 = arith.constant 0 : index
    %c0_123 = arith.constant 0 : index
    %155 = vector.load %arg5[%c0_120, %c2_121, %c0_122, %c0_123] : memref<3x3x8x8xf32, #tpu.memory_space<vmem>>, vector<1x1x8x8xf32>
    %156 = vector.shape_cast %155 : vector<1x1x8x8xf32> to vector<8x8xf32>
    %cst_124 = arith.constant dense<0.000000e+00> : vector<8x256xf32>
    %157 = tpu.matmul %156, %154, %cst_124 {dimension_numbers = #tpu.dot_dimension_numbers<[1], [0], [0], [1], [0, 0, 1, 1], [], []>} : vector<8x8xf32>, vector<8x256xf32>, vector<8x256xf32> -> vector<8x256xf32>
    %158 = arith.addf %149, %157 : vector<8x256xf32>
    %c1_i32_125 = arith.constant 1 : i32
    %159 = tpu.dynamic_rotate %130 by %c1_i32_125 dim 1 : vector<8x256xf32>, i32 -> vector<8x256xf32>
    %c1_126 = arith.constant 1 : index
    %c0_127 = arith.constant 0 : index
    %c0_128 = arith.constant 0 : index
    %c0_129 = arith.constant 0 : index
    %160 = vector.load %arg2[%c1_126, %c0_127, %c0_128, %c0_129] : memref<3x3x1x256xf32, #tpu.memory_space<vmem>>, vector<1x1x1x256xf32>
    %161 = vector.shape_cast %160 : vector<1x1x1x256xf32> to vector<1x256xf32>
    %162 = vector.broadcast %161 : vector<1x256xf32> to vector<8x256xf32>
    %163 = arith.mulf %159, %162 : vector<8x256xf32>
    %c1_130 = arith.constant 1 : index
    %c0_131 = arith.constant 0 : index
    %c0_132 = arith.constant 0 : index
    %c0_133 = arith.constant 0 : index
    %164 = vector.load %arg5[%c1_130, %c0_131, %c0_132, %c0_133] : memref<3x3x8x8xf32, #tpu.memory_space<vmem>>, vector<1x1x8x8xf32>
    %165 = vector.shape_cast %164 : vector<1x1x8x8xf32> to vector<8x8xf32>
    %cst_134 = arith.constant dense<0.000000e+00> : vector<8x256xf32>
    %166 = tpu.matmul %165, %163, %cst_134 {dimension_numbers = #tpu.dot_dimension_numbers<[1], [0], [0], [1], [0, 0, 1, 1], [], []>} : vector<8x8xf32>, vector<8x256xf32>, vector<8x256xf32> -> vector<8x256xf32>
    %167 = arith.addf %158, %166 : vector<8x256xf32>
    %c1_135 = arith.constant 1 : index
    %c1_136 = arith.constant 1 : index
    %c0_137 = arith.constant 0 : index
    %c0_138 = arith.constant 0 : index
    %168 = vector.load %arg5[%c1_135, %c1_136, %c0_137, %c0_138] : memref<3x3x8x8xf32, #tpu.memory_space<vmem>>, vector<1x1x8x8xf32>
    %169 = vector.shape_cast %168 : vector<1x1x8x8xf32> to vector<8x8xf32>
    %cst_139 = arith.constant dense<0.000000e+00> : vector<8x256xf32>
    %170 = tpu.matmul %169, %130, %cst_139 {dimension_numbers = #tpu.dot_dimension_numbers<[1], [0], [0], [1], [0, 0, 1, 1], [], []>} : vector<8x8xf32>, vector<8x256xf32>, vector<8x256xf32> -> vector<8x256xf32>
    %171 = arith.addf %167, %170 : vector<8x256xf32>
    %c255_i32_140 = arith.constant 255 : i32
    %172 = tpu.dynamic_rotate %130 by %c255_i32_140 dim 1 : vector<8x256xf32>, i32 -> vector<8x256xf32>
    %c1_141 = arith.constant 1 : index
    %c2_142 = arith.constant 2 : index
    %c0_143 = arith.constant 0 : index
    %c0_144 = arith.constant 0 : index
    %173 = vector.load %arg2[%c1_141, %c2_142, %c0_143, %c0_144] : memref<3x3x1x256xf32, #tpu.memory_space<vmem>>, vector<1x1x1x256xf32>
    %174 = vector.shape_cast %173 : vector<1x1x1x256xf32> to vector<1x256xf32>
    %175 = vector.broadcast %174 : vector<1x256xf32> to vector<8x256xf32>
    %176 = arith.mulf %172, %175 : vector<8x256xf32>
    %c1_145 = arith.constant 1 : index
    %c2_146 = arith.constant 2 : index
    %c0_147 = arith.constant 0 : index
    %c0_148 = arith.constant 0 : index
    %177 = vector.load %arg5[%c1_145, %c2_146, %c0_147, %c0_148] : memref<3x3x8x8xf32, #tpu.memory_space<vmem>>, vector<1x1x8x8xf32>
    %178 = vector.shape_cast %177 : vector<1x1x8x8xf32> to vector<8x8xf32>
    %cst_149 = arith.constant dense<0.000000e+00> : vector<8x256xf32>
    %179 = tpu.matmul %178, %176, %cst_149 {dimension_numbers = #tpu.dot_dimension_numbers<[1], [0], [0], [1], [0, 0, 1, 1], [], []>} : vector<8x8xf32>, vector<8x256xf32>, vector<8x256xf32> -> vector<8x256xf32>
    %180 = arith.addf %171, %179 : vector<8x256xf32>
    %c241_i32_150 = arith.constant 241 : i32
    %181 = tpu.dynamic_rotate %130 by %c241_i32_150 dim 1 : vector<8x256xf32>, i32 -> vector<8x256xf32>
    %c2_151 = arith.constant 2 : index
    %c0_152 = arith.constant 0 : index
    %c0_153 = arith.constant 0 : index
    %c0_154 = arith.constant 0 : index
    %182 = vector.load %arg2[%c2_151, %c0_152, %c0_153, %c0_154] : memref<3x3x1x256xf32, #tpu.memory_space<vmem>>, vector<1x1x1x256xf32>
    %183 = vector.shape_cast %182 : vector<1x1x1x256xf32> to vector<1x256xf32>
    %184 = vector.broadcast %183 : vector<1x256xf32> to vector<8x256xf32>
    %185 = arith.mulf %181, %184 : vector<8x256xf32>
    %c2_155 = arith.constant 2 : index
    %c0_156 = arith.constant 0 : index
    %c0_157 = arith.constant 0 : index
    %c0_158 = arith.constant 0 : index
    %186 = vector.load %arg5[%c2_155, %c0_156, %c0_157, %c0_158] : memref<3x3x8x8xf32, #tpu.memory_space<vmem>>, vector<1x1x8x8xf32>
    %187 = vector.shape_cast %186 : vector<1x1x8x8xf32> to vector<8x8xf32>
    %cst_159 = arith.constant dense<0.000000e+00> : vector<8x256xf32>
    %188 = tpu.matmul %187, %185, %cst_159 {dimension_numbers = #tpu.dot_dimension_numbers<[1], [0], [0], [1], [0, 0, 1, 1], [], []>} : vector<8x8xf32>, vector<8x256xf32>, vector<8x256xf32> -> vector<8x256xf32>
    %189 = arith.addf %180, %188 : vector<8x256xf32>
    %c240_i32_160 = arith.constant 240 : i32
    %190 = tpu.dynamic_rotate %130 by %c240_i32_160 dim 1 : vector<8x256xf32>, i32 -> vector<8x256xf32>
    %c2_161 = arith.constant 2 : index
    %c1_162 = arith.constant 1 : index
    %c0_163 = arith.constant 0 : index
    %c0_164 = arith.constant 0 : index
    %191 = vector.load %arg2[%c2_161, %c1_162, %c0_163, %c0_164] : memref<3x3x1x256xf32, #tpu.memory_space<vmem>>, vector<1x1x1x256xf32>
    %192 = vector.shape_cast %191 : vector<1x1x1x256xf32> to vector<1x256xf32>
    %193 = vector.broadcast %192 : vector<1x256xf32> to vector<8x256xf32>
    %194 = arith.mulf %190, %193 : vector<8x256xf32>
    %c2_165 = arith.constant 2 : index
    %c1_166 = arith.constant 1 : index
    %c0_167 = arith.constant 0 : index
    %c0_168 = arith.constant 0 : index
    %195 = vector.load %arg5[%c2_165, %c1_166, %c0_167, %c0_168] : memref<3x3x8x8xf32, #tpu.memory_space<vmem>>, vector<1x1x8x8xf32>
    %196 = vector.shape_cast %195 : vector<1x1x8x8xf32> to vector<8x8xf32>
    %cst_169 = arith.constant dense<0.000000e+00> : vector<8x256xf32>
    %197 = tpu.matmul %196, %194, %cst_169 {dimension_numbers = #tpu.dot_dimension_numbers<[1], [0], [0], [1], [0, 0, 1, 1], [], []>} : vector<8x8xf32>, vector<8x256xf32>, vector<8x256xf32> -> vector<8x256xf32>
    %198 = arith.addf %189, %197 : vector<8x256xf32>
    %c239_i32_170 = arith.constant 239 : i32
    %199 = tpu.dynamic_rotate %130 by %c239_i32_170 dim 1 : vector<8x256xf32>, i32 -> vector<8x256xf32>
    %c2_171 = arith.constant 2 : index
    %c2_172 = arith.constant 2 : index
    %c0_173 = arith.constant 0 : index
    %c0_174 = arith.constant 0 : index
    %200 = vector.load %arg2[%c2_171, %c2_172, %c0_173, %c0_174] : memref<3x3x1x256xf32, #tpu.memory_space<vmem>>, vector<1x1x1x256xf32>
    %201 = vector.shape_cast %200 : vector<1x1x1x256xf32> to vector<1x256xf32>
    %202 = vector.broadcast %201 : vector<1x256xf32> to vector<8x256xf32>
    %203 = arith.mulf %199, %202 : vector<8x256xf32>
    %c2_175 = arith.constant 2 : index
    %c2_176 = arith.constant 2 : index
    %c0_177 = arith.constant 0 : index
    %c0_178 = arith.constant 0 : index
    %204 = vector.load %arg5[%c2_175, %c2_176, %c0_177, %c0_178] : memref<3x3x8x8xf32, #tpu.memory_space<vmem>>, vector<1x1x8x8xf32>
    %205 = vector.shape_cast %204 : vector<1x1x8x8xf32> to vector<8x8xf32>
    %cst_179 = arith.constant dense<0.000000e+00> : vector<8x256xf32>
    %206 = tpu.matmul %205, %203, %cst_179 {dimension_numbers = #tpu.dot_dimension_numbers<[1], [0], [0], [1], [0, 0, 1, 1], [], []>} : vector<8x8xf32>, vector<8x256xf32>, vector<8x256xf32> -> vector<8x256xf32>
    %207 = arith.addf %198, %206 : vector<8x256xf32>
    %c0_180 = arith.constant 0 : index
    %c0_181 = arith.constant 0 : index
    %208 = vector.load %arg6[%c0_180, %c0_181] : memref<8x1xf32, #tpu.memory_space<vmem>>, vector<8x1xf32>
    %209 = vector.broadcast %208 : vector<8x1xf32> to vector<8x256xf32>
    %210 = arith.addf %207, %209 : vector<8x256xf32>
    %cst_182 = arith.constant dense<0x7F800000> : vector<8xf32>
    %211 = vector.multi_reduction <minimumf>, %210, %cst_182 [1] : vector<8x256xf32> to vector<8xf32>
    %212 = vector.shape_cast %211 : vector<8xf32> to vector<8x1xf32>
    %cst_183 = arith.constant dense<0xFF800000> : vector<8xf32>
    %213 = vector.multi_reduction <maximumf>, %210, %cst_183 [1] : vector<8x256xf32> to vector<8xf32>
    %214 = vector.shape_cast %213 : vector<8xf32> to vector<8x1xf32>
    %215 = vector.extract_strided_slice %212 {offsets = [0, 0], sizes = [4, 1], strides = [1, 1]} : vector<8x1xf32> to vector<4x1xf32>
    %216 = vector.shape_cast %215 : vector<4x1xf32> to vector<1x4x1xf32>
    %cst_184 = arith.constant dense<0x7F800000> : vector<1xf32>
    %217 = vector.multi_reduction <minimumf>, %216, %cst_184 [1, 2] : vector<1x4x1xf32> to vector<1xf32>
    %218 = vector.shape_cast %217 : vector<1xf32> to vector<1x1x1xf32>
    %219 = vector.extract %218[0, 0, 0] : f32 from vector<1x1x1xf32>
    %220 = vector.extract_strided_slice %212 {offsets = [4, 0], sizes = [4, 1], strides = [1, 1]} : vector<8x1xf32> to vector<4x1xf32>
    %221 = vector.shape_cast %220 : vector<4x1xf32> to vector<1x4x1xf32>
    %cst_185 = arith.constant dense<0x7F800000> : vector<1xf32>
    %222 = vector.multi_reduction <minimumf>, %221, %cst_185 [1, 2] : vector<1x4x1xf32> to vector<1xf32>
    %223 = vector.shape_cast %222 : vector<1xf32> to vector<1x1x1xf32>
    %224 = vector.extract %223[0, 0, 0] : f32 from vector<1x1x1xf32>
    %225 = vector.extract_strided_slice %214 {offsets = [0, 0], sizes = [4, 1], strides = [1, 1]} : vector<8x1xf32> to vector<4x1xf32>
    %226 = vector.shape_cast %225 : vector<4x1xf32> to vector<1x4x1xf32>
    %cst_186 = arith.constant dense<0xFF800000> : vector<1xf32>
    %227 = vector.multi_reduction <maximumf>, %226, %cst_186 [1, 2] : vector<1x4x1xf32> to vector<1xf32>
    %228 = vector.shape_cast %227 : vector<1xf32> to vector<1x1x1xf32>
    %229 = vector.extract %228[0, 0, 0] : f32 from vector<1x1x1xf32>
    %230 = vector.extract_strided_slice %214 {offsets = [4, 0], sizes = [4, 1], strides = [1, 1]} : vector<8x1xf32> to vector<4x1xf32>
    %231 = vector.shape_cast %230 : vector<4x1xf32> to vector<1x4x1xf32>
    %cst_187 = arith.constant dense<0xFF800000> : vector<1xf32>
    %232 = vector.multi_reduction <maximumf>, %231, %cst_187 [1, 2] : vector<1x4x1xf32> to vector<1xf32>
    %233 = vector.shape_cast %232 : vector<1xf32> to vector<1x1x1xf32>
    %234 = vector.extract %233[0, 0, 0] : f32 from vector<1x1x1xf32>
    %235 = arith.subf %219, %89 : f32
    %cst_188 = arith.constant 0.00999999977 : f32
    %236 = arith.mulf %cst_188, %235 : f32
    %237 = arith.addf %89, %236 : f32
    %238 = arith.subf %224, %94 : f32
    %cst_189 = arith.constant 0.00999999977 : f32
    %239 = arith.mulf %cst_189, %238 : f32
    %240 = arith.addf %94, %239 : f32
    %241 = arith.subf %229, %99 : f32
    %cst_190 = arith.constant 0.00999999977 : f32
    %242 = arith.mulf %cst_190, %241 : f32
    %243 = arith.addf %99, %242 : f32
    %244 = arith.subf %234, %104 : f32
    %cst_191 = arith.constant 0.00999999977 : f32
    %245 = arith.mulf %cst_191, %244 : f32
    %246 = arith.addf %104, %245 : f32
    %cst_192 = arith.constant 0.000000e+00 : f32
    %247 = arith.minimumf %237, %cst_192 : f32
    %cst_193 = arith.constant 0.000000e+00 : f32
    %248 = arith.maximumf %243, %cst_193 : f32
    %249 = arith.subf %248, %247 : f32
    %cst_194 = arith.constant 2.550000e+02 : f32
    %250 = arith.divf %249, %cst_194 : f32
    %cst_195 = arith.constant 1.1920929E-7 : f32
    %251 = arith.maximumf %250, %cst_195 : f32
    %cst_196 = arith.constant 0.000000e+00 : f32
    %252 = arith.minimumf %240, %cst_196 : f32
    %cst_197 = arith.constant 0.000000e+00 : f32
    %253 = arith.maximumf %246, %cst_197 : f32
    %254 = arith.subf %253, %252 : f32
    %cst_198 = arith.constant 2.550000e+02 : f32
    %255 = arith.divf %254, %cst_198 : f32
    %cst_199 = arith.constant 1.1920929E-7 : f32
    %256 = arith.maximumf %255, %cst_199 : f32
    %257 = vector.broadcast %251 : f32 to vector<1x1xf32>
    %258 = vector.shape_cast %257 : vector<1x1xf32> to vector<1x1xf32>
    %259 = vector.broadcast %258 : vector<1x1xf32> to vector<4x1xf32>
    %260 = vector.broadcast %256 : f32 to vector<1x1xf32>
    %261 = vector.shape_cast %260 : vector<1x1xf32> to vector<1x1xf32>
    %262 = vector.broadcast %261 : vector<1x1xf32> to vector<4x1xf32>
    %263 = tpu.concatenate %259, %262 in 0 : vector<4x1xf32>, vector<4x1xf32> -> vector<8x1xf32>
    %264 = vector.broadcast %263 : vector<8x1xf32> to vector<8x256xf32>
    %265 = arith.divf %210, %264 : vector<8x256xf32>
    %266 = math.roundeven %265 : vector<8x256xf32>
    %cst_200 = arith.constant -1.280000e+02 : f32
    %cst_201 = arith.constant 1.270000e+02 : f32
    %267 = vector.broadcast %cst_200 : f32 to vector<8x256xf32>
    %268 = arith.maximumf %267, %266 : vector<8x256xf32>
    %269 = vector.broadcast %cst_201 : f32 to vector<8x256xf32>
    %270 = arith.minimumf %269, %268 : vector<8x256xf32>
    %271 = vector.broadcast %263 : vector<8x1xf32> to vector<8x256xf32>
    %272 = arith.mulf %270, %271 : vector<8x256xf32>
    %cst_202 = arith.constant 0.000000e+00 : f32
    %273 = vector.broadcast %cst_202 : f32 to vector<8x256xf32>
    %c17_i32_203 = arith.constant 17 : i32
    %274 = tpu.dynamic_rotate %272 by %c17_i32_203 dim 1 : vector<8x256xf32>, i32 -> vector<8x256xf32>
    %c0_204 = arith.constant 0 : index
    %c0_205 = arith.constant 0 : index
    %c0_206 = arith.constant 0 : index
    %c0_207 = arith.constant 0 : index
    %275 = vector.load %arg2[%c0_204, %c0_205, %c0_206, %c0_207] : memref<3x3x1x256xf32, #tpu.memory_space<vmem>>, vector<1x1x1x256xf32>
    %276 = vector.shape_cast %275 : vector<1x1x1x256xf32> to vector<1x256xf32>
    %277 = vector.broadcast %276 : vector<1x256xf32> to vector<8x256xf32>
    %278 = arith.mulf %274, %277 : vector<8x256xf32>
    %c0_208 = arith.constant 0 : index
    %c0_209 = arith.constant 0 : index
    %c0_210 = arith.constant 0 : index
    %c0_211 = arith.constant 0 : index
    %279 = vector.load %arg7[%c0_208, %c0_209, %c0_210, %c0_211] : memref<3x3x8x8xf32, #tpu.memory_space<vmem>>, vector<1x1x8x8xf32>
    %280 = vector.shape_cast %279 : vector<1x1x8x8xf32> to vector<8x8xf32>
    %cst_212 = arith.constant dense<0.000000e+00> : vector<8x256xf32>
    %281 = tpu.matmul %280, %278, %cst_212 {dimension_numbers = #tpu.dot_dimension_numbers<[1], [0], [0], [1], [0, 0, 1, 1], [], []>} : vector<8x8xf32>, vector<8x256xf32>, vector<8x256xf32> -> vector<8x256xf32>
    %282 = arith.addf %273, %281 : vector<8x256xf32>
    %c16_i32_213 = arith.constant 16 : i32
    %283 = tpu.dynamic_rotate %272 by %c16_i32_213 dim 1 : vector<8x256xf32>, i32 -> vector<8x256xf32>
    %c0_214 = arith.constant 0 : index
    %c1_215 = arith.constant 1 : index
    %c0_216 = arith.constant 0 : index
    %c0_217 = arith.constant 0 : index
    %284 = vector.load %arg2[%c0_214, %c1_215, %c0_216, %c0_217] : memref<3x3x1x256xf32, #tpu.memory_space<vmem>>, vector<1x1x1x256xf32>
    %285 = vector.shape_cast %284 : vector<1x1x1x256xf32> to vector<1x256xf32>
    %286 = vector.broadcast %285 : vector<1x256xf32> to vector<8x256xf32>
    %287 = arith.mulf %283, %286 : vector<8x256xf32>
    %c0_218 = arith.constant 0 : index
    %c1_219 = arith.constant 1 : index
    %c0_220 = arith.constant 0 : index
    %c0_221 = arith.constant 0 : index
    %288 = vector.load %arg7[%c0_218, %c1_219, %c0_220, %c0_221] : memref<3x3x8x8xf32, #tpu.memory_space<vmem>>, vector<1x1x8x8xf32>
    %289 = vector.shape_cast %288 : vector<1x1x8x8xf32> to vector<8x8xf32>
    %cst_222 = arith.constant dense<0.000000e+00> : vector<8x256xf32>
    %290 = tpu.matmul %289, %287, %cst_222 {dimension_numbers = #tpu.dot_dimension_numbers<[1], [0], [0], [1], [0, 0, 1, 1], [], []>} : vector<8x8xf32>, vector<8x256xf32>, vector<8x256xf32> -> vector<8x256xf32>
    %291 = arith.addf %282, %290 : vector<8x256xf32>
    %c15_i32_223 = arith.constant 15 : i32
    %292 = tpu.dynamic_rotate %272 by %c15_i32_223 dim 1 : vector<8x256xf32>, i32 -> vector<8x256xf32>
    %c0_224 = arith.constant 0 : index
    %c2_225 = arith.constant 2 : index
    %c0_226 = arith.constant 0 : index
    %c0_227 = arith.constant 0 : index
    %293 = vector.load %arg2[%c0_224, %c2_225, %c0_226, %c0_227] : memref<3x3x1x256xf32, #tpu.memory_space<vmem>>, vector<1x1x1x256xf32>
    %294 = vector.shape_cast %293 : vector<1x1x1x256xf32> to vector<1x256xf32>
    %295 = vector.broadcast %294 : vector<1x256xf32> to vector<8x256xf32>
    %296 = arith.mulf %292, %295 : vector<8x256xf32>
    %c0_228 = arith.constant 0 : index
    %c2_229 = arith.constant 2 : index
    %c0_230 = arith.constant 0 : index
    %c0_231 = arith.constant 0 : index
    %297 = vector.load %arg7[%c0_228, %c2_229, %c0_230, %c0_231] : memref<3x3x8x8xf32, #tpu.memory_space<vmem>>, vector<1x1x8x8xf32>
    %298 = vector.shape_cast %297 : vector<1x1x8x8xf32> to vector<8x8xf32>
    %cst_232 = arith.constant dense<0.000000e+00> : vector<8x256xf32>
    %299 = tpu.matmul %298, %296, %cst_232 {dimension_numbers = #tpu.dot_dimension_numbers<[1], [0], [0], [1], [0, 0, 1, 1], [], []>} : vector<8x8xf32>, vector<8x256xf32>, vector<8x256xf32> -> vector<8x256xf32>
    %300 = arith.addf %291, %299 : vector<8x256xf32>
    %c1_i32_233 = arith.constant 1 : i32
    %301 = tpu.dynamic_rotate %272 by %c1_i32_233 dim 1 : vector<8x256xf32>, i32 -> vector<8x256xf32>
    %c1_234 = arith.constant 1 : index
    %c0_235 = arith.constant 0 : index
    %c0_236 = arith.constant 0 : index
    %c0_237 = arith.constant 0 : index
    %302 = vector.load %arg2[%c1_234, %c0_235, %c0_236, %c0_237] : memref<3x3x1x256xf32, #tpu.memory_space<vmem>>, vector<1x1x1x256xf32>
    %303 = vector.shape_cast %302 : vector<1x1x1x256xf32> to vector<1x256xf32>
    %304 = vector.broadcast %303 : vector<1x256xf32> to vector<8x256xf32>
    %305 = arith.mulf %301, %304 : vector<8x256xf32>
    %c1_238 = arith.constant 1 : index
    %c0_239 = arith.constant 0 : index
    %c0_240 = arith.constant 0 : index
    %c0_241 = arith.constant 0 : index
    %306 = vector.load %arg7[%c1_238, %c0_239, %c0_240, %c0_241] : memref<3x3x8x8xf32, #tpu.memory_space<vmem>>, vector<1x1x8x8xf32>
    %307 = vector.shape_cast %306 : vector<1x1x8x8xf32> to vector<8x8xf32>
    %cst_242 = arith.constant dense<0.000000e+00> : vector<8x256xf32>
    %308 = tpu.matmul %307, %305, %cst_242 {dimension_numbers = #tpu.dot_dimension_numbers<[1], [0], [0], [1], [0, 0, 1, 1], [], []>} : vector<8x8xf32>, vector<8x256xf32>, vector<8x256xf32> -> vector<8x256xf32>
    %309 = arith.addf %300, %308 : vector<8x256xf32>
    %c1_243 = arith.constant 1 : index
    %c1_244 = arith.constant 1 : index
    %c0_245 = arith.constant 0 : index
    %c0_246 = arith.constant 0 : index
    %310 = vector.load %arg7[%c1_243, %c1_244, %c0_245, %c0_246] : memref<3x3x8x8xf32, #tpu.memory_space<vmem>>, vector<1x1x8x8xf32>
    %311 = vector.shape_cast %310 : vector<1x1x8x8xf32> to vector<8x8xf32>
    %cst_247 = arith.constant dense<0.000000e+00> : vector<8x256xf32>
    %312 = tpu.matmul %311, %272, %cst_247 {dimension_numbers = #tpu.dot_dimension_numbers<[1], [0], [0], [1], [0, 0, 1, 1], [], []>} : vector<8x8xf32>, vector<8x256xf32>, vector<8x256xf32> -> vector<8x256xf32>
    %313 = arith.addf %309, %312 : vector<8x256xf32>
    %c255_i32_248 = arith.constant 255 : i32
    %314 = tpu.dynamic_rotate %272 by %c255_i32_248 dim 1 : vector<8x256xf32>, i32 -> vector<8x256xf32>
    %c1_249 = arith.constant 1 : index
    %c2_250 = arith.constant 2 : index
    %c0_251 = arith.constant 0 : index
    %c0_252 = arith.constant 0 : index
    %315 = vector.load %arg2[%c1_249, %c2_250, %c0_251, %c0_252] : memref<3x3x1x256xf32, #tpu.memory_space<vmem>>, vector<1x1x1x256xf32>
    %316 = vector.shape_cast %315 : vector<1x1x1x256xf32> to vector<1x256xf32>
    %317 = vector.broadcast %316 : vector<1x256xf32> to vector<8x256xf32>
    %318 = arith.mulf %314, %317 : vector<8x256xf32>
    %c1_253 = arith.constant 1 : index
    %c2_254 = arith.constant 2 : index
    %c0_255 = arith.constant 0 : index
    %c0_256 = arith.constant 0 : index
    %319 = vector.load %arg7[%c1_253, %c2_254, %c0_255, %c0_256] : memref<3x3x8x8xf32, #tpu.memory_space<vmem>>, vector<1x1x8x8xf32>
    %320 = vector.shape_cast %319 : vector<1x1x8x8xf32> to vector<8x8xf32>
    %cst_257 = arith.constant dense<0.000000e+00> : vector<8x256xf32>
    %321 = tpu.matmul %320, %318, %cst_257 {dimension_numbers = #tpu.dot_dimension_numbers<[1], [0], [0], [1], [0, 0, 1, 1], [], []>} : vector<8x8xf32>, vector<8x256xf32>, vector<8x256xf32> -> vector<8x256xf32>
    %322 = arith.addf %313, %321 : vector<8x256xf32>
    %c241_i32_258 = arith.constant 241 : i32
    %323 = tpu.dynamic_rotate %272 by %c241_i32_258 dim 1 : vector<8x256xf32>, i32 -> vector<8x256xf32>
    %c2_259 = arith.constant 2 : index
    %c0_260 = arith.constant 0 : index
    %c0_261 = arith.constant 0 : index
    %c0_262 = arith.constant 0 : index
    %324 = vector.load %arg2[%c2_259, %c0_260, %c0_261, %c0_262] : memref<3x3x1x256xf32, #tpu.memory_space<vmem>>, vector<1x1x1x256xf32>
    %325 = vector.shape_cast %324 : vector<1x1x1x256xf32> to vector<1x256xf32>
    %326 = vector.broadcast %325 : vector<1x256xf32> to vector<8x256xf32>
    %327 = arith.mulf %323, %326 : vector<8x256xf32>
    %c2_263 = arith.constant 2 : index
    %c0_264 = arith.constant 0 : index
    %c0_265 = arith.constant 0 : index
    %c0_266 = arith.constant 0 : index
    %328 = vector.load %arg7[%c2_263, %c0_264, %c0_265, %c0_266] : memref<3x3x8x8xf32, #tpu.memory_space<vmem>>, vector<1x1x8x8xf32>
    %329 = vector.shape_cast %328 : vector<1x1x8x8xf32> to vector<8x8xf32>
    %cst_267 = arith.constant dense<0.000000e+00> : vector<8x256xf32>
    %330 = tpu.matmul %329, %327, %cst_267 {dimension_numbers = #tpu.dot_dimension_numbers<[1], [0], [0], [1], [0, 0, 1, 1], [], []>} : vector<8x8xf32>, vector<8x256xf32>, vector<8x256xf32> -> vector<8x256xf32>
    %331 = arith.addf %322, %330 : vector<8x256xf32>
    %c240_i32_268 = arith.constant 240 : i32
    %332 = tpu.dynamic_rotate %272 by %c240_i32_268 dim 1 : vector<8x256xf32>, i32 -> vector<8x256xf32>
    %c2_269 = arith.constant 2 : index
    %c1_270 = arith.constant 1 : index
    %c0_271 = arith.constant 0 : index
    %c0_272 = arith.constant 0 : index
    %333 = vector.load %arg2[%c2_269, %c1_270, %c0_271, %c0_272] : memref<3x3x1x256xf32, #tpu.memory_space<vmem>>, vector<1x1x1x256xf32>
    %334 = vector.shape_cast %333 : vector<1x1x1x256xf32> to vector<1x256xf32>
    %335 = vector.broadcast %334 : vector<1x256xf32> to vector<8x256xf32>
    %336 = arith.mulf %332, %335 : vector<8x256xf32>
    %c2_273 = arith.constant 2 : index
    %c1_274 = arith.constant 1 : index
    %c0_275 = arith.constant 0 : index
    %c0_276 = arith.constant 0 : index
    %337 = vector.load %arg7[%c2_273, %c1_274, %c0_275, %c0_276] : memref<3x3x8x8xf32, #tpu.memory_space<vmem>>, vector<1x1x8x8xf32>
    %338 = vector.shape_cast %337 : vector<1x1x8x8xf32> to vector<8x8xf32>
    %cst_277 = arith.constant dense<0.000000e+00> : vector<8x256xf32>
    %339 = tpu.matmul %338, %336, %cst_277 {dimension_numbers = #tpu.dot_dimension_numbers<[1], [0], [0], [1], [0, 0, 1, 1], [], []>} : vector<8x8xf32>, vector<8x256xf32>, vector<8x256xf32> -> vector<8x256xf32>
    %340 = arith.addf %331, %339 : vector<8x256xf32>
    %c239_i32_278 = arith.constant 239 : i32
    %341 = tpu.dynamic_rotate %272 by %c239_i32_278 dim 1 : vector<8x256xf32>, i32 -> vector<8x256xf32>
    %c2_279 = arith.constant 2 : index
    %c2_280 = arith.constant 2 : index
    %c0_281 = arith.constant 0 : index
    %c0_282 = arith.constant 0 : index
    %342 = vector.load %arg2[%c2_279, %c2_280, %c0_281, %c0_282] : memref<3x3x1x256xf32, #tpu.memory_space<vmem>>, vector<1x1x1x256xf32>
    %343 = vector.shape_cast %342 : vector<1x1x1x256xf32> to vector<1x256xf32>
    %344 = vector.broadcast %343 : vector<1x256xf32> to vector<8x256xf32>
    %345 = arith.mulf %341, %344 : vector<8x256xf32>
    %c2_283 = arith.constant 2 : index
    %c2_284 = arith.constant 2 : index
    %c0_285 = arith.constant 0 : index
    %c0_286 = arith.constant 0 : index
    %346 = vector.load %arg7[%c2_283, %c2_284, %c0_285, %c0_286] : memref<3x3x8x8xf32, #tpu.memory_space<vmem>>, vector<1x1x8x8xf32>
    %347 = vector.shape_cast %346 : vector<1x1x8x8xf32> to vector<8x8xf32>
    %cst_287 = arith.constant dense<0.000000e+00> : vector<8x256xf32>
    %348 = tpu.matmul %347, %345, %cst_287 {dimension_numbers = #tpu.dot_dimension_numbers<[1], [0], [0], [1], [0, 0, 1, 1], [], []>} : vector<8x8xf32>, vector<8x256xf32>, vector<8x256xf32> -> vector<8x256xf32>
    %349 = arith.addf %340, %348 : vector<8x256xf32>
    %c0_288 = arith.constant 0 : index
    %c0_289 = arith.constant 0 : index
    %350 = vector.load %arg8[%c0_288, %c0_289] : memref<8x1xf32, #tpu.memory_space<vmem>>, vector<8x1xf32>
    %351 = vector.broadcast %350 : vector<8x1xf32> to vector<8x256xf32>
    %352 = arith.addf %349, %351 : vector<8x256xf32>
    %c0_290 = arith.constant 0 : index
    %c0_291 = arith.constant 0 : index
    %353 = vector.load %arg9[%c0_290, %c0_291] : memref<8x256xf32, #tpu.memory_space<vmem>>, vector<8x256xf32>
    tpu.vector_store %arg9[%c0_290, %c0_291], %352 {strides = array<i32>} : memref<8x256xf32, #tpu.memory_space<vmem>>, vector<8x256xf32>,
    return
  }
  func.func @transform_0(%arg0: i32) -> (i32, i32) {
    %c0_i32 = arith.constant 0 : i32
    %c0_i32_0 = arith.constant 0 : i32
    return %arg0, %c0_i32 : i32, i32
  }
  func.func @transform_1(%arg0: i32) -> (i32, i32, i32, i32) {
    %c0_i32 = arith.constant 0 : i32
    %c0_i32_0 = arith.constant 0 : i32
    %c0_i32_1 = arith.constant 0 : i32
    %c0_i32_2 = arith.constant 0 : i32
    %c0_i32_3 = arith.constant 0 : i32
    return %c0_i32, %c0_i32_0, %c0_i32_1, %c0_i32_2 : i32, i32, i32, i32
  }
  func.func @transform_2(%arg0: i32) -> (i32, i32, i32, i32) {
    %c0_i32 = arith.constant 0 : i32
    %c0_i32_0 = arith.constant 0 : i32
    %c0_i32_1 = arith.constant 0 : i32
    %c0_i32_2 = arith.constant 0 : i32
    %c0_i32_3 = arith.constant 0 : i32
    return %c0_i32, %c0_i32_0, %c0_i32_1, %c0_i32_2 : i32, i32, i32, i32
  }
  func.func @transform_3(%arg0: i32) -> (i32, i32) {
    %c0_i32 = arith.constant 0 : i32
    %c0_i32_0 = arith.constant 0 : i32
    %c0_i32_1 = arith.constant 0 : i32
    return %c0_i32, %c0_i32_0 : i32, i32
  }
  func.func @transform_4(%arg0: i32) -> (i32, i32, i32, i32) {
    %c0_i32 = arith.constant 0 : i32
    %c0_i32_0 = arith.constant 0 : i32
    %c0_i32_1 = arith.constant 0 : i32
    %c0_i32_2 = arith.constant 0 : i32
    %c0_i32_3 = arith.constant 0 : i32
    return %c0_i32, %c0_i32_0, %c0_i32_1, %c0_i32_2 : i32, i32, i32, i32
  }
  func.func @transform_5(%arg0: i32) -> (i32, i32) {
    %c0_i32 = arith.constant 0 : i32
    %c0_i32_0 = arith.constant 0 : i32
    %c0_i32_1 = arith.constant 0 : i32
    return %c0_i32, %c0_i32_0 : i32, i32
  }
  func.func @transform_6(%arg0: i32) -> (i32, i32, i32, i32) {
    %c0_i32 = arith.constant 0 : i32
    %c0_i32_0 = arith.constant 0 : i32
    %c0_i32_1 = arith.constant 0 : i32
    %c0_i32_2 = arith.constant 0 : i32
    %c0_i32_3 = arith.constant 0 : i32
    return %c0_i32, %c0_i32_0, %c0_i32_1, %c0_i32_2 : i32, i32, i32, i32
  }
  func.func @transform_7(%arg0: i32) -> (i32, i32) {
    %c0_i32 = arith.constant 0 : i32
    %c0_i32_0 = arith.constant 0 : i32
    %c0_i32_1 = arith.constant 0 : i32
    return %c0_i32, %c0_i32_0 : i32, i32
  }
  func.func @transform_8(%arg0: i32) -> (i32, i32) {
    %c0_i32 = arith.constant 0 : i32
    %c0_i32_0 = arith.constant 0 : i32
    return %arg0, %c0_i32 : i32, i32
  }
}

</mosaic_0001>

<llo_original>
// kernel: tile.18
$region0: #{tile.18}
  #allocation0 [shape = 's32[1]{0}', space=sflag, size = 0x4, scoped, tag = 'scoped memory for tile.18']
  %s0 = inlined_call_operand.vmem [shape: f32[4], index: 0, kind: input, shape index: {}]
  %s1 = inlined_call_operand.vmem [shape: f32[2,4], index: 1, kind: output, shape index: {}]
  // Predicated region
  $region2: #{tile.18} parent=0 // pred_check
    _
  $region3: #{tile.18} parent=0 // pred_check_branch
    %3 = sbr.rel (0) target = $region5
  $region4: #{tile.18} parent=0 // pred_region
    _
  $region5: #{tile.18} parent=0 // pred_fallthru
    _
  %v4 = vld [vmem:[%s0] ss:$0 sm:$0xff]
  %5 = vst [vmem:[%s1] sm:$0x3] %v4

// kernel: tile.0
$region0: #{tile.0}
  %s0 = inlined_call_operand.vmem [shape: f32[2,4], index: 0, kind: input, shape index: {}]
  %s1 = inlined_call_operand.vmem [shape: f32[8,1], index: 1, kind: output, shape index: {}]
  $region1: #{tile.0} parent=0
    #allocation0 [shape = 'u8[4096]{0}', space=vmem, size = 0x1000, scoped, tag = 'scoped mem for input reshape']
    %s3 = ssub.s32 4, 1
    %v4 = vld [vmem:[%s0] sm:%s3]
    %5 = vst [vmem:[#allocation0] sm:%s3] %v4
    %v6 = vld [vmem:[#allocation0] sm:$0x3]
    %vm7 = vcmask 7168
    %8 = vst.msk [vmem:[%s1] ss:$4 sm:$0x3] %vm7, %v6
    %v9 = vld [vmem:[#allocation0] sm:$0x3]
    %10 = vrot.lane.b32.xlu0 %v9, 127
    %v11 = vpop.permute.xlu0 %10
    %vm12 = vcmask 7168
    %s13 = scalar_lea.vmem %s1, 1
    %14 = vst.msk [vmem:[%s13] ss:$4 sm:$0x3] %vm12, %v11
    %v15 = vld [vmem:[#allocation0] sm:$0x3]
    %16 = vrot.lane.b32.xlu0 %v15, 126
    %v17 = vpop.permute.xlu0 %16
    %vm18 = vcmask 7168
    %s19 = scalar_lea.vmem %s1, 2
    %20 = vst.msk [vmem:[%s19] ss:$4 sm:$0x3] %vm18, %v17
    %v21 = vld [vmem:[#allocation0] sm:$0x3]
    %22 = vrot.lane.b32.xlu0 %v21, 125
    %v23 = vpop.permute.xlu0 %22
    %vm24 = vcmask 7168
    %s25 = scalar_lea.vmem %s1, 3
    %26 = vst.msk [vmem:[%s25] ss:$4 sm:$0x3] %vm24, %v23

// kernel: quantiseze_forward.1
$region0: #{quantiseze_forward.1}
  #allocation0 [shape = 'u32[]', space=smem, size = 0x4, offset = 0x4, fixed_abs, tag = 'smem constant byte address 0x4 - core index']
  #allocation1 [shape = 'u32[72,128]{1,0:T(1,128)}', space=vmem, size = 0x9000, scoped, tag = 'internal scratch']
  %s0 = inlined_call_operand.vmem [shape: f32[8,256], index: 0, kind: input, shape index: {}]
  %s1 = inlined_call_operand.vmem [shape: f32[3,3,1,256], index: 1, kind: input, shape index: {}]
  %s2 = inlined_call_operand.vmem [shape: f32[3,3,8,8], index: 2, kind: input, shape index: {}]
  %s3 = inlined_call_operand.vmem [shape: f32[8,1], index: 3, kind: input, shape index: {}]
  %s4 = inlined_call_operand.vmem [shape: f32[3,3,8,8], index: 4, kind: input, shape index: {}]
  %s5 = inlined_call_operand.vmem [shape: f32[8,1], index: 5, kind: input, shape index: {}]
  %s6 = inlined_call_operand.vmem [shape: f32[3,3,8,8], index: 6, kind: input, shape index: {}]
  %s7 = inlined_call_operand.vmem [shape: f32[8,1], index: 7, kind: input, shape index: {}]
  %s8 = inlined_call_operand.vmem [shape: f32[8,256], index: 8, kind: output, shape index: {}]
  %s9 = sld [smem:[#allocation0]]
  $region42: #{quantiseze_forward.1} parent=0
    _
  %s11 = ssub.s32 1, %s9
  %s12 = scalar_select 0, %s11, %s9
  // Predicated region
  $region2: #{quantiseze_forward.1} parent=0 // pred_check
    _
  $region3: #{quantiseze_forward.1} parent=0 // pred_check_branch
    %14 = sbr.rel (0) target = $region5
  $region4: #{quantiseze_forward.1} parent=0 // pred_region
    _
  $region5: #{quantiseze_forward.1} parent=0 // pred_fallthru
    _
  // Predicated region
  $region6: #{quantiseze_forward.1} parent=0 // pred_check
    _
  $region7: #{quantiseze_forward.1} parent=0 // pred_check_branch
    %16 = sbr.rel (0) target = $region9
  $region8: #{quantiseze_forward.1} parent=0 // pred_region
    _
  $region9: #{quantiseze_forward.1} parent=0 // pred_fallthru
    _
  // Predicated region
  $region10: #{quantiseze_forward.1} parent=0 // pred_check
    _
  $region11: #{quantiseze_forward.1} parent=0 // pred_check_branch
    %18 = sbr.rel (0) target = $region13
  $region12: #{quantiseze_forward.1} parent=0 // pred_region
    _
  $region13: #{quantiseze_forward.1} parent=0 // pred_fallthru
    _
  // Predicated region
  $region14: #{quantiseze_forward.1} parent=0 // pred_check
    _
  $region15: #{quantiseze_forward.1} parent=0 // pred_check_branch
    %20 = sbr.rel (0) target = $region17
  $region16: #{quantiseze_forward.1} parent=0 // pred_region
    _
  $region17: #{quantiseze_forward.1} parent=0 // pred_fallthru
    _
  // Predicated region
  $region18: #{quantiseze_forward.1} parent=0 // pred_check
    _
  $region19: #{quantiseze_forward.1} parent=0 // pred_check_branch
    %22 = sbr.rel (0) target = $region21
  $region20: #{quantiseze_forward.1} parent=0 // pred_region
    _
  $region21: #{quantiseze_forward.1} parent=0 // pred_fallthru
    _
  // Predicated region
  $region22: #{quantiseze_forward.1} parent=0 // pred_check
    _
  $region23: #{quantiseze_forward.1} parent=0 // pred_check_branch
    %24 = sbr.rel (0) target = $region25
  $region24: #{quantiseze_forward.1} parent=0 // pred_region
    _
  $region25: #{quantiseze_forward.1} parent=0 // pred_fallthru
    _
  // Predicated region
  $region26: #{quantiseze_forward.1} parent=0 // pred_check
    _
  $region27: #{quantiseze_forward.1} parent=0 // pred_check_branch
    %26 = sbr.rel (0) target = $region29
  $region28: #{quantiseze_forward.1} parent=0 // pred_region
    _
  $region29: #{quantiseze_forward.1} parent=0 // pred_fallthru
    _
  // Predicated region
  $region30: #{quantiseze_forward.1} parent=0 // pred_check
    _
  $region31: #{quantiseze_forward.1} parent=0 // pred_check_branch
    %28 = sbr.rel (0) target = $region33
  $region32: #{quantiseze_forward.1} parent=0 // pred_region
    _
  $region33: #{quantiseze_forward.1} parent=0 // pred_fallthru
    _
  %v29 = vld [vmem:[%s0] sm:$0xff]
  %v30 = vld [vmem:[%s0 + $0x8] sm:$0xff]
  %31 = vrot.lane.b32.xlu0 %v29, 17
  %v32 = vpop.permute.xlu0 %31
  %33 = vrot.lane.b32.xlu0 %v30, 17
  %v34 = vpop.permute.xlu0 %33
  %v35 = vlaneseq
  %v36 = vand.u32 %v35, 127
  %vm37 = vcmp.lt.s32.totalorder %v36, 17
  %v38 = vsel %vm37, %v32, %v34
  %v39 = vsel %vm37, %v34, %v32
  %v40 = vld [vmem:[%s1] sm:$0x3]
  %v42 = vperm.slane %v40, 0
  %v43 = vperm.slane %v40, 1
  %v46 = vmul.f32 %v39, %v42
  %v47 = vmul.f32 %v38, %v43
  %v48 = vld [vmem:[%s2] sm:$0xff]
  %49 = vrot.lane.b32.xlu0 %v29, 16
  %v50 = vpop.permute.xlu0 %49
  %51 = vrot.lane.b32.xlu0 %v30, 16
  %v52 = vpop.permute.xlu0 %51
  %vm53 = vcmp.lt.s32.totalorder %v36, 16
  %v54 = vsel %vm53, %v50, %v52
  %v55 = vsel %vm53, %v52, %v50
  %s56 = scalar_lea.vmem %s1, 2
  %v57 = vld [vmem:[%s56] sm:$0x3]
  %v59 = vperm.slane %v57, 0
  %v60 = vperm.slane %v57, 1
  %v63 = vmul.f32 %v55, %v59
  %v64 = vmul.f32 %v54, %v60
  %s65 = scalar_lea.vmem %s2, 8
  %v66 = vld [vmem:[%s65] sm:$0xff]
  %vm67 = vcmask 64512
  %v69 = vsel %vm67, %v66, 0
  %71 = vmatpush.msra.mxu0 0.0
  %72 = vmatpush.msra.mxu0 0.0
  %73 = vmatpush.msra.mxu0 0.0
  %74 = vmatpush.msra.mxu0 0.0
  %75 = vmatpush.msra.mxu0 0.0
  %76 = vmatpush.msra.mxu0 0.0
  %77 = vmatpush.msra.mxu0 0.0
  %78 = vmatpush.msra.mxu0 0.0
  %79 = vmatpush.msra.mxu0 0.0
  %80 = vmatpush.msra.mxu0 0.0
  %81 = vmatpush.msra.mxu0 0.0
  %82 = vmatpush.msra.mxu0 0.0
  %83 = vmatpush.msra.mxu0 0.0
  %84 = vmatpush.msra.mxu0 0.0
  %85 = vmatpush.msra.mxu0 0.0
  %86 = vmatpush.msra.mxu0 %v63
  %87 = vmatmul.f32.gmra.mxu0 %v69
  %v88 = vpop.f32.mrf.mxu0
  %v89 = vadd.f32 0.0, %v88
  %90 = vdwg.mxu0
  %91 = vmatpush.msra.mxu0 0.0
  %92 = vmatpush.msra.mxu0 0.0
  %93 = vmatpush.msra.mxu0 0.0
  %94 = vmatpush.msra.mxu0 0.0
  %95 = vmatpush.msra.mxu0 0.0
  %96 = vmatpush.msra.mxu0 0.0
  %97 = vmatpush.msra.mxu0 0.0
  %98 = vmatpush.msra.mxu0 0.0
  %99 = vmatpush.msra.mxu0 0.0
  %100 = vmatpush.msra.mxu0 0.0
  %101 = vmatpush.msra.mxu0 0.0
  %102 = vmatpush.msra.mxu0 0.0
  %103 = vmatpush.msra.mxu0 0.0
  %104 = vmatpush.msra.mxu0 0.0
  %105 = vmatpush.msra.mxu0 0.0
  %106 = vmatpush.msra.mxu0 %v64
  %107 = vmatmul.f32.gmra.mxu0 %v69
  %v108 = vpop.f32.mrf.mxu0
  %v109 = vadd.f32 0.0, %v108
  %110 = vdwg.mxu0
  %v112 = vsel %vm67, %v48, 0
  %114 = vmatpush.msra.mxu0 0.0
  %115 = vmatpush.msra.mxu0 0.0
  %116 = vmatpush.msra.mxu0 0.0
  %117 = vmatpush.msra.mxu0 0.0
  %118 = vmatpush.msra.mxu0 0.0
  %119 = vmatpush.msra.mxu0 0.0
  %120 = vmatpush.msra.mxu0 0.0
  %121 = vmatpush.msra.mxu0 0.0
  %122 = vmatpush.msra.mxu0 0.0
  %123 = vmatpush.msra.mxu0 0.0
  %124 = vmatpush.msra.mxu0 0.0
  %125 = vmatpush.msra.mxu0 0.0
  %126 = vmatpush.msra.mxu0 0.0
  %127 = vmatpush.msra.mxu0 0.0
  %128 = vmatpush.msra.mxu0 0.0
  %129 = vmatpush.msra.mxu0 %v46
  %130 = vmatmul.f32.gmra.mxu0 %v112
  %v131 = vpop.f32.mrf.mxu0
  %v132 = vadd.f32 %v89, %v131
  %133 = vdwg.mxu0
  %134 = vmatpush.msra.mxu0 0.0
  %135 = vmatpush.msra.mxu0 0.0
  %136 = vmatpush.msra.mxu0 0.0
  %137 = vmatpush.msra.mxu0 0.0
  %138 = vmatpush.msra.mxu0 0.0
  %139 = vmatpush.msra.mxu0 0.0
  %140 = vmatpush.msra.mxu0 0.0
  %141 = vmatpush.msra.mxu0 0.0
  %142 = vmatpush.msra.mxu0 0.0
  %143 = vmatpush.msra.mxu0 0.0
  %144 = vmatpush.msra.mxu0 0.0
  %145 = vmatpush.msra.mxu0 0.0
  %146 = vmatpush.msra.mxu0 0.0
  %147 = vmatpush.msra.mxu0 0.0
  %148 = vmatpush.msra.mxu0 0.0
  %149 = vmatpush.msra.mxu0 %v47
  %150 = vmatmul.f32.gmra.mxu0 %v112
  %v151 = vpop.f32.mrf.mxu0
  %v152 = vadd.f32 %v109, %v151
  %153 = vdwg.mxu0
  %154 = vrot.lane.b32.xlu0 %v29, 15
  %v155 = vpop.permute.xlu0 %154
  %156 = vrot.lane.b32.xlu0 %v30, 15
  %v157 = vpop.permute.xlu0 %156
  %vm158 = vcmp.lt.s32.totalorder %v36, 15
  %v159 = vsel %vm158, %v155, %v157
  %v160 = vsel %vm158, %v157, %v155
  %s161 = scalar_lea.vmem %s1, 4
  %v162 = vld [vmem:[%s161] sm:$0x3]
  %v164 = vperm.slane %v162, 0
  %v165 = vperm.slane %v162, 1
  %v168 = vmul.f32 %v160, %v164
  %v169 = vmul.f32 %v159, %v165
  %s170 = scalar_lea.vmem %s2, 16
  %v171 = vld [vmem:[%s170] sm:$0xff]
  %v173 = vsel %vm67, %v171, 0
  %175 = vmatpush.msra.mxu0 0.0
  %176 = vmatpush.msra.mxu0 0.0
  %177 = vmatpush.msra.mxu0 0.0
  %178 = vmatpush.msra.mxu0 0.0
  %179 = vmatpush.msra.mxu0 0.0
  %180 = vmatpush.msra.mxu0 0.0
  %181 = vmatpush.msra.mxu0 0.0
  %182 = vmatpush.msra.mxu0 0.0
  %183 = vmatpush.msra.mxu0 0.0
  %184 = vmatpush.msra.mxu0 0.0
  %185 = vmatpush.msra.mxu0 0.0
  %186 = vmatpush.msra.mxu0 0.0
  %187 = vmatpush.msra.mxu0 0.0
  %188 = vmatpush.msra.mxu0 0.0
  %189 = vmatpush.msra.mxu0 0.0
  %190 = vmatpush.msra.mxu0 %v168
  %191 = vmatmul.f32.gmra.mxu0 %v173
  %v192 = vpop.f32.mrf.mxu0
  %v193 = vadd.f32 0.0, %v192
  %194 = vdwg.mxu0
  %195 = vmatpush.msra.mxu0 0.0
  %196 = vmatpush.msra.mxu0 0.0
  %197 = vmatpush.msra.mxu0 0.0
  %198 = vmatpush.msra.mxu0 0.0
  %199 = vmatpush.msra.mxu0 0.0
  %200 = vmatpush.msra.mxu0 0.0
  %201 = vmatpush.msra.mxu0 0.0
  %202 = vmatpush.msra.mxu0 0.0
  %203 = vmatpush.msra.mxu0 0.0
  %204 = vmatpush.msra.mxu0 0.0
  %205 = vmatpush.msra.mxu0 0.0
  %206 = vmatpush.msra.mxu0 0.0
  %207 = vmatpush.msra.mxu0 0.0
  %208 = vmatpush.msra.mxu0 0.0
  %209 = vmatpush.msra.mxu0 0.0
  %210 = vmatpush.msra.mxu0 %v169
  %211 = vmatmul.f32.gmra.mxu0 %v173
  %v212 = vpop.f32.mrf.mxu0
  %v213 = vadd.f32 0.0, %v212
  %214 = vdwg.mxu0
  %v215 = vadd.f32 %v132, %v193
  %v216 = vadd.f32 %v152, %v213
  %217 = vrot.lane.b32.xlu0 %v29, 1
  %v218 = vpop.permute.xlu0 %217
  %219 = vrot.lane.b32.xlu0 %v30, 1
  %v220 = vpop.permute.xlu0 %219
  %vm221 = vcmp.lt.s32.totalorder %v36, 1
  %v222 = vsel %vm221, %v218, %v220
  %v223 = vsel %vm221, %v220, %v218
  %s224 = scalar_lea.vmem %s1, 6
  %v225 = vld [vmem:[%s224] sm:$0x3]
  %v227 = vperm.slane %v225, 0
  %v228 = vperm.slane %v225, 1
  %v231 = vmul.f32 %v223, %v227
  %v232 = vmul.f32 %v222, %v228
  %s233 = scalar_lea.vmem %s2, 24
  %v234 = vld [vmem:[%s233] sm:$0xff]
  %v236 = vsel %vm67, %v234, 0
  %238 = vmatpush.msra.mxu0 0.0
  %239 = vmatpush.msra.mxu0 0.0
  %240 = vmatpush.msra.mxu0 0.0
  %241 = vmatpush.msra.mxu0 0.0
  %242 = vmatpush.msra.mxu0 0.0
  %243 = vmatpush.msra.mxu0 0.0
  %244 = vmatpush.msra.mxu0 0.0
  %245 = vmatpush.msra.mxu0 0.0
  %246 = vmatpush.msra.mxu0 0.0
  %247 = vmatpush.msra.mxu0 0.0
  %248 = vmatpush.msra.mxu0 0.0
  %249 = vmatpush.msra.mxu0 0.0
  %250 = vmatpush.msra.mxu0 0.0
  %251 = vmatpush.msra.mxu0 0.0
  %252 = vmatpush.msra.mxu0 0.0
  %253 = vmatpush.msra.mxu0 %v231
  %254 = vmatmul.f32.gmra.mxu0 %v236
  %v255 = vpop.f32.mrf.mxu0
  %v256 = vadd.f32 0.0, %v255
  %257 = vdwg.mxu0
  %258 = vmatpush.msra.mxu0 0.0
  %259 = vmatpush.msra.mxu0 0.0
  %260 = vmatpush.msra.mxu0 0.0
  %261 = vmatpush.msra.mxu0 0.0
  %262 = vmatpush.msra.mxu0 0.0
  %263 = vmatpush.msra.mxu0 0.0
  %264 = vmatpush.msra.mxu0 0.0
  %265 = vmatpush.msra.mxu0 0.0
  %266 = vmatpush.msra.mxu0 0.0
  %267 = vmatpush.msra.mxu0 0.0
  %268 = vmatpush.msra.mxu0 0.0
  %269 = vmatpush.msra.mxu0 0.0
  %270 = vmatpush.msra.mxu0 0.0
  %271 = vmatpush.msra.mxu0 0.0
  %272 = vmatpush.msra.mxu0 0.0
  %273 = vmatpush.msra.mxu0 %v232
  %274 = vmatmul.f32.gmra.mxu0 %v236
  %v275 = vpop.f32.mrf.mxu0
  %v276 = vadd.f32 0.0, %v275
  %277 = vdwg.mxu0
  %v278 = vadd.f32 %v215, %v256
  %v279 = vadd.f32 %v216, %v276
  %s280 = scalar_lea.vmem %s2, 32
  %v281 = vld [vmem:[%s280] sm:$0xff]
  %v283 = vsel %vm67, %v281, 0
  %285 = vmatpush.msra.mxu0 0.0
  %286 = vmatpush.msra.mxu0 0.0
  %287 = vmatpush.msra.mxu0 0.0
  %288 = vmatpush.msra.mxu0 0.0
  %289 = vmatpush.msra.mxu0 0.0
  %290 = vmatpush.msra.mxu0 0.0
  %291 = vmatpush.msra.mxu0 0.0
  %292 = vmatpush.msra.mxu0 0.0
  %293 = vmatpush.msra.mxu0 0.0
  %294 = vmatpush.msra.mxu0 0.0
  %295 = vmatpush.msra.mxu0 0.0
  %296 = vmatpush.msra.mxu0 0.0
  %297 = vmatpush.msra.mxu0 0.0
  %298 = vmatpush.msra.mxu0 0.0
  %299 = vmatpush.msra.mxu0 0.0
  %300 = vmatpush.msra.mxu0 %v29
  %301 = vmatmul.f32.gmra.mxu0 %v283
  %v302 = vpop.f32.mrf.mxu0
  %v303 = vadd.f32 0.0, %v302
  %304 = vdwg.mxu0
  %305 = vmatpush.msra.mxu0 0.0
  %306 = vmatpush.msra.mxu0 0.0
  %307 = vmatpush.msra.mxu0 0.0
  %308 = vmatpush.msra.mxu0 0.0
  %309 = vmatpush.msra.mxu0 0.0
  %310 = vmatpush.msra.mxu0 0.0
  %311 = vmatpush.msra.mxu0 0.0
  %312 = vmatpush.msra.mxu0 0.0
  %313 = vmatpush.msra.mxu0 0.0
  %314 = vmatpush.msra.mxu0 0.0
  %315 = vmatpush.msra.mxu0 0.0
  %316 = vmatpush.msra.mxu0 0.0
  %317 = vmatpush.msra.mxu0 0.0
  %318 = vmatpush.msra.mxu0 0.0
  %319 = vmatpush.msra.mxu0 0.0
  %320 = vmatpush.msra.mxu0 %v30
  %321 = vmatmul.f32.gmra.mxu0 %v283
  %v322 = vpop.f32.mrf.mxu0
  %v323 = vadd.f32 0.0, %v322
  %324 = vdwg.mxu0
  %v325 = vadd.f32 %v278, %v303
  %v326 = vadd.f32 %v279, %v323
  %327 = vrot.lane.b32.xlu0 %v29, 127
  %v328 = vpop.permute.xlu0 %327
  %329 = vrot.lane.b32.xlu0 %v30, 127
  %v330 = vpop.permute.xlu0 %329
  %vm331 = vcmp.lt.s32.totalorder %v36, 127
  %v332 = vsel %vm331, %v328, %v330
  %v333 = vsel %vm331, %v330, %v328
  %s334 = scalar_lea.vmem %s1, 10
  %v335 = vld [vmem:[%s334] sm:$0x3]
  %v337 = vperm.slane %v335, 0
  %v338 = vperm.slane %v335, 1
  %v341 = vmul.f32 %v332, %v337
  %v342 = vmul.f32 %v333, %v338
  %s343 = scalar_lea.vmem %s2, 40
  %v344 = vld [vmem:[%s343] sm:$0xff]
  %v346 = vsel %vm67, %v344, 0
  %348 = vmatpush.msra.mxu0 0.0
  %349 = vmatpush.msra.mxu0 0.0
  %350 = vmatpush.msra.mxu0 0.0
  %351 = vmatpush.msra.mxu0 0.0
  %352 = vmatpush.msra.mxu0 0.0
  %353 = vmatpush.msra.mxu0 0.0
  %354 = vmatpush.msra.mxu0 0.0
  %355 = vmatpush.msra.mxu0 0.0
  %356 = vmatpush.msra.mxu0 0.0
  %357 = vmatpush.msra.mxu0 0.0
  %358 = vmatpush.msra.mxu0 0.0
  %359 = vmatpush.msra.mxu0 0.0
  %360 = vmatpush.msra.mxu0 0.0
  %361 = vmatpush.msra.mxu0 0.0
  %362 = vmatpush.msra.mxu0 0.0
  %363 = vmatpush.msra.mxu0 %v341
  %364 = vmatmul.f32.gmra.mxu0 %v346
  %v365 = vpop.f32.mrf.mxu0
  %v366 = vadd.f32 0.0, %v365
  %367 = vdwg.mxu0
  %368 = vmatpush.msra.mxu0 0.0
  %369 = vmatpush.msra.mxu0 0.0
  %370 = vmatpush.msra.mxu0 0.0
  %371 = vmatpush.msra.mxu0 0.0
  %372 = vmatpush.msra.mxu0 0.0
  %373 = vmatpush.msra.mxu0 0.0
  %374 = vmatpush.msra.mxu0 0.0
  %375 = vmatpush.msra.mxu0 0.0
  %376 = vmatpush.msra.mxu0 0.0
  %377 = vmatpush.msra.mxu0 0.0
  %378 = vmatpush.msra.mxu0 0.0
  %379 = vmatpush.msra.mxu0 0.0
  %380 = vmatpush.msra.mxu0 0.0
  %381 = vmatpush.msra.mxu0 0.0
  %382 = vmatpush.msra.mxu0 0.0
  %383 = vmatpush.msra.mxu0 %v342
  %384 = vmatmul.f32.gmra.mxu0 %v346
  %v385 = vpop.f32.mrf.mxu0
  %v386 = vadd.f32 0.0, %v385
  %387 = vdwg.mxu0
  %v388 = vadd.f32 %v325, %v366
  %v389 = vadd.f32 %v326, %v386
  %390 = vrot.lane.b32.xlu0 %v29, 113
  %v391 = vpop.permute.xlu0 %390
  %392 = vrot.lane.b32.xlu0 %v30, 113
  %v393 = vpop.permute.xlu0 %392
  %vm394 = vcmp.lt.s32.totalorder %v36, 113
  %v395 = vsel %vm394, %v391, %v393
  %v396 = vsel %vm394, %v393, %v391
  %s397 = scalar_lea.vmem %s1, 12
  %v398 = vld [vmem:[%s397] sm:$0x3]
  %v400 = vperm.slane %v398, 0
  %v401 = vperm.slane %v398, 1
  %v404 = vmul.f32 %v395, %v400
  %v405 = vmul.f32 %v396, %v401
  %s406 = scalar_lea.vmem %s2, 48
  %v407 = vld [vmem:[%s406] sm:$0xff]
  %v409 = vsel %vm67, %v407, 0
  %411 = vmatpush.msra.mxu0 0.0
  %412 = vmatpush.msra.mxu0 0.0
  %413 = vmatpush.msra.mxu0 0.0
  %414 = vmatpush.msra.mxu0 0.0
  %415 = vmatpush.msra.mxu0 0.0
  %416 = vmatpush.msra.mxu0 0.0
  %417 = vmatpush.msra.mxu0 0.0
  %418 = vmatpush.msra.mxu0 0.0
  %419 = vmatpush.msra.mxu0 0.0
  %420 = vmatpush.msra.mxu0 0.0
  %421 = vmatpush.msra.mxu0 0.0
  %422 = vmatpush.msra.mxu0 0.0
  %423 = vmatpush.msra.mxu0 0.0
  %424 = vmatpush.msra.mxu0 0.0
  %425 = vmatpush.msra.mxu0 0.0
  %426 = vmatpush.msra.mxu0 %v404
  %427 = vmatmul.f32.gmra.mxu0 %v409
  %v428 = vpop.f32.mrf.mxu0
  %v429 = vadd.f32 0.0, %v428
  %430 = vdwg.mxu0
  %431 = vmatpush.msra.mxu0 0.0
  %432 = vmatpush.msra.mxu0 0.0
  %433 = vmatpush.msra.mxu0 0.0
  %434 = vmatpush.msra.mxu0 0.0
  %435 = vmatpush.msra.mxu0 0.0
  %436 = vmatpush.msra.mxu0 0.0
  %437 = vmatpush.msra.mxu0 0.0
  %438 = vmatpush.msra.mxu0 0.0
  %439 = vmatpush.msra.mxu0 0.0
  %440 = vmatpush.msra.mxu0 0.0
  %441 = vmatpush.msra.mxu0 0.0
  %442 = vmatpush.msra.mxu0 0.0
  %443 = vmatpush.msra.mxu0 0.0
  %444 = vmatpush.msra.mxu0 0.0
  %445 = vmatpush.msra.mxu0 0.0
  %446 = vmatpush.msra.mxu0 %v405
  %447 = vmatmul.f32.gmra.mxu0 %v409
  %v448 = vpop.f32.mrf.mxu0
  %v449 = vadd.f32 0.0, %v448
  %450 = vdwg.mxu0
  %v451 = vadd.f32 %v388, %v429
  %v452 = vadd.f32 %v389, %v449
  %453 = vrot.lane.b32.xlu0 %v29, 112
  %v454 = vpop.permute.xlu0 %453
  %455 = vrot.lane.b32.xlu0 %v30, 112
  %v456 = vpop.permute.xlu0 %455
  %vm457 = vcmp.lt.s32.totalorder %v36, 112
  %v458 = vsel %vm457, %v454, %v456
  %v459 = vsel %vm457, %v456, %v454
  %s460 = scalar_lea.vmem %s1, 14
  %v461 = vld [vmem:[%s460] sm:$0x3]
  %v463 = vperm.slane %v461, 0
  %v464 = vperm.slane %v461, 1
  %v467 = vmul.f32 %v458, %v463
  %v468 = vmul.f32 %v459, %v464
  %s469 = scalar_lea.vmem %s2, 56
  %v470 = vld [vmem:[%s469] sm:$0xff]
  %v472 = vsel %vm67, %v470, 0
  %474 = vmatpush.msra.mxu0 0.0
  %475 = vmatpush.msra.mxu0 0.0
  %476 = vmatpush.msra.mxu0 0.0
  %477 = vmatpush.msra.mxu0 0.0
  %478 = vmatpush.msra.mxu0 0.0
  %479 = vmatpush.msra.mxu0 0.0
  %480 = vmatpush.msra.mxu0 0.0
  %481 = vmatpush.msra.mxu0 0.0
  %482 = vmatpush.msra.mxu0 0.0
  %483 = vmatpush.msra.mxu0 0.0
  %484 = vmatpush.msra.mxu0 0.0
  %485 = vmatpush.msra.mxu0 0.0
  %486 = vmatpush.msra.mxu0 0.0
  %487 = vmatpush.msra.mxu0 0.0
  %488 = vmatpush.msra.mxu0 0.0
  %489 = vmatpush.msra.mxu0 %v467
  %490 = vmatmul.f32.gmra.mxu0 %v472
  %v491 = vpop.f32.mrf.mxu0
  %v492 = vadd.f32 0.0, %v491
  %493 = vdwg.mxu0
  %494 = vmatpush.msra.mxu0 0.0
  %495 = vmatpush.msra.mxu0 0.0
  %496 = vmatpush.msra.mxu0 0.0
  %497 = vmatpush.msra.mxu0 0.0
  %498 = vmatpush.msra.mxu0 0.0
  %499 = vmatpush.msra.mxu0 0.0
  %500 = vmatpush.msra.mxu0 0.0
  %501 = vmatpush.msra.mxu0 0.0
  %502 = vmatpush.msra.mxu0 0.0
  %503 = vmatpush.msra.mxu0 0.0
  %504 = vmatpush.msra.mxu0 0.0
  %505 = vmatpush.msra.mxu0 0.0
  %506 = vmatpush.msra.mxu0 0.0
  %507 = vmatpush.msra.mxu0 0.0
  %508 = vmatpush.msra.mxu0 0.0
  %509 = vmatpush.msra.mxu0 %v468
  %510 = vmatmul.f32.gmra.mxu0 %v472
  %v511 = vpop.f32.mrf.mxu0
  %v512 = vadd.f32 0.0, %v511
  %513 = vdwg.mxu0
  %v514 = vadd.f32 %v451, %v492
  %v515 = vadd.f32 %v452, %v512
  %516 = vrot.lane.b32.xlu0 %v29, 111
  %v517 = vpop.permute.xlu0 %516
  %518 = vrot.lane.b32.xlu0 %v30, 111
  %v519 = vpop.permute.xlu0 %518
  %vm520 = vcmp.lt.s32.totalorder %v36, 111
  %v521 = vsel %vm520, %v517, %v519
  %v522 = vsel %vm520, %v519, %v517
  %s523 = scalar_lea.vmem %s1, 16
  %v524 = vld [vmem:[%s523] sm:$0x3]
  %v526 = vperm.slane %v524, 0
  %v527 = vperm.slane %v524, 1
  %v530 = vmul.f32 %v521, %v526
  %v531 = vmul.f32 %v522, %v527
  %s532 = scalar_lea.vmem %s2, 64
  %v533 = vld [vmem:[%s532] sm:$0xff]
  %v535 = vsel %vm67, %v533, 0
  %537 = vmatpush.msra.mxu0 0.0
  %538 = vmatpush.msra.mxu0 0.0
  %539 = vmatpush.msra.mxu0 0.0
  %540 = vmatpush.msra.mxu0 0.0
  %541 = vmatpush.msra.mxu0 0.0
  %542 = vmatpush.msra.mxu0 0.0
  %543 = vmatpush.msra.mxu0 0.0
  %544 = vmatpush.msra.mxu0 0.0
  %545 = vmatpush.msra.mxu0 0.0
  %546 = vmatpush.msra.mxu0 0.0
  %547 = vmatpush.msra.mxu0 0.0
  %548 = vmatpush.msra.mxu0 0.0
  %549 = vmatpush.msra.mxu0 0.0
  %550 = vmatpush.msra.mxu0 0.0
  %551 = vmatpush.msra.mxu0 0.0
  %552 = vmatpush.msra.mxu0 %v530
  %553 = vmatmul.f32.gmra.mxu0 %v535
  %v554 = vpop.f32.mrf.mxu0
  %v555 = vadd.f32 0.0, %v554
  %556 = vdwg.mxu0
  %557 = vmatpush.msra.mxu0 0.0
  %558 = vmatpush.msra.mxu0 0.0
  %559 = vmatpush.msra.mxu0 0.0
  %560 = vmatpush.msra.mxu0 0.0
  %561 = vmatpush.msra.mxu0 0.0
  %562 = vmatpush.msra.mxu0 0.0
  %563 = vmatpush.msra.mxu0 0.0
  %564 = vmatpush.msra.mxu0 0.0
  %565 = vmatpush.msra.mxu0 0.0
  %566 = vmatpush.msra.mxu0 0.0
  %567 = vmatpush.msra.mxu0 0.0
  %568 = vmatpush.msra.mxu0 0.0
  %569 = vmatpush.msra.mxu0 0.0
  %570 = vmatpush.msra.mxu0 0.0
  %571 = vmatpush.msra.mxu0 0.0
  %572 = vmatpush.msra.mxu0 %v531
  %573 = vmatmul.f32.gmra.mxu0 %v535
  %v574 = vpop.f32.mrf.mxu0
  %v575 = vadd.f32 0.0, %v574
  %576 = vdwg.mxu0
  %v577 = vadd.f32 %v514, %v555
  %v578 = vadd.f32 %v515, %v575
  %v579 = vld [vmem:[%s3] sm:$0xff]
  %581 = vset.pattern.permute.xlu0 0
  %582 = vperm.xlu0 %581, %v579
  %v583 = vpop.permute.xlu0 %582
  %v585 = vadd.f32 %v577, %v583
  %v586 = vadd.f32 %v578, %v583
  %v587 = vmin.f32 %v585, %v586
  %588 = vmin.xlane.f32.xlu0 %v587
  %v589 = vpop.xlane.xlu0 %588
  %v590 = vmax.f32 %v585, %v586
  %591 = vmax.xlane.f32.xlu0 %v590
  %v592 = vpop.xlane.xlu0 %591
  %vm593 = vcmask 1043456
  %v594 = vsel %vm593, %v589, inf
  %v595 = vrot.slane %v594, 4
  %v596 = vmin.f32 %v594, %v595
  %v597 = vrot.slane %v596, 2
  %v598 = vmin.f32 %v596, %v597
  %v599 = vrot.slane %v598, 1
  %v600 = vmin.f32 %v598, %v599
  %s601 = vtos %v600
  %vm602 = vcmask 1047556
  %v603 = vsel %vm602, %v589, inf
  %v604 = vrot.slane %v603, 4
  %v605 = vmin.f32 %v603, %v604
  %v606 = vrot.slane %v605, 2
  %v607 = vmin.f32 %v605, %v606
  %v608 = vrot.slane %v607, 1
  %v609 = vmin.f32 %v607, %v608
  %s610 = vtos %v609
  %v611 = vsel %vm593, %v592, -inf
  %v612 = vrot.slane %v611, 4
  %v613 = vmax.f32 %v611, %v612
  %v614 = vrot.slane %v613, 2
  %v615 = vmax.f32 %v613, %v614
  %v616 = vrot.slane %v615, 1
  %v617 = vmax.f32 %v615, %v616
  %s618 = vtos %v617
  %v619 = vsel %vm602, %v592, -inf
  %v620 = vrot.slane %v619, 4
  %v621 = vmax.f32 %v619, %v620
  %v622 = vrot.slane %v621, 2
  %v623 = vmax.f32 %v621, %v622
  %v624 = vrot.slane %v623, 1
  %v625 = vmax.f32 %v623, %v624
  %s626 = vtos %v625
  %s627 = smin.f32 %s601, 0.0
  %s628 = smax.f32 %s618, 0.0
  %s629 = ssub.f32 %s628, %s627
  %v630 = vrcp.pop 255.0
  %v631 = vmul.f32 255.0, %v630
  %v632 = vsub.f32 1.0, %v631
  %v633 = vmul.f32 %v630, %v632
  %v634 = vadd.f32 %v630, %v633
  %vm635 = vweird.f32 %v630
  %v636 = vsel %vm635, %v630, %v634
  %s637 = vtos %v636
  %s638 = smul.f32 %s629, %s637
  %s639 = smax.f32 %s638, 1.1920929e-07
  %s640 = smin.f32 %s610, 0.0
  %s641 = smax.f32 %s626, 0.0
  %s642 = ssub.f32 %s641, %s640
  %v643 = vrcp.pop 255.0
  %v644 = vmul.f32 255.0, %v643
  %v645 = vsub.f32 1.0, %v644
  %v646 = vmul.f32 %v643, %v645
  %v647 = vadd.f32 %v643, %v646
  %vm648 = vweird.f32 %v643
  %v649 = vsel %vm648, %v643, %v647
  %s650 = vtos %v649
  %s651 = smul.f32 %s642, %s650
  %s652 = smax.f32 %s651, 1.1920929e-07
  %v653 = vstv %s639
  %v654 = vstv %s652
  %v655 = vsel %vm593, %v653, %v654
  %657 = vset.pattern.permute.xlu0 0
  %658 = vperm.xlu0 %657, %v655
  %v659 = vpop.permute.xlu0 %658
  %v661 = vrcp.pop %v659
  %v662 = vmul.f32 %v659, %v661
  %v663 = vsub.f32 1.0, %v662
  %v664 = vmul.f32 %v661, %v663
  %v665 = vadd.f32 %v661, %v664
  %vm666 = vweird.f32 %v659
  %vm667 = vweird.f32 %v661
  %vm668 = vmor %vm666, %vm667
  %v669 = vsel %vm668, %v661, %v665
  %v670 = vand.u32 2147483647, %v659
  %vm671 = vcmp.eq.f32.partialorder %v670, 8.507059e+37
  %v672 = vand.u32 %v659, 2147483648
  %v673 = vor.u32 1.1754944e-38, %v672
  %v674 = vsel %vm671, %v673, %v669
  %v675 = vmul.f32 %v585, %v674
  %v676 = vmul.f32 %v586, %v674
  %v677 = vround.ne.pseudo %v675
  %v678 = vround.ne.pseudo %v676
  %v679 = vmax.f32 %v677, -128.0
  %v680 = vmax.f32 %v678, -128.0
  %v681 = vmin.f32 %v679, 127.0
  %v682 = vmin.f32 %v680, 127.0
  %v683 = vmul.f32 %v681, %v659
  %v684 = vmul.f32 %v682, %v659
  %685 = vrot.lane.b32.xlu0 %v683, 17
  %v686 = vpop.permute.xlu0 %685
  %687 = vrot.lane.b32.xlu0 %v684, 17
  %v688 = vpop.permute.xlu0 %687
  %v689 = vsel %vm37, %v686, %v688
  %v690 = vsel %vm37, %v688, %v686
  %v691 = vmul.f32 %v690, %v42
  %v692 = vmul.f32 %v689, %v43
  %v693 = vld [vmem:[%s4] sm:$0xff]
  %694 = vrot.lane.b32.xlu0 %v683, 16
  %v695 = vpop.permute.xlu0 %694
  %696 = vrot.lane.b32.xlu0 %v684, 16
  %v697 = vpop.permute.xlu0 %696
  %v698 = vsel %vm53, %v695, %v697
  %v699 = vsel %vm53, %v697, %v695
  %v700 = vmul.f32 %v699, %v59
  %v701 = vmul.f32 %v698, %v60
  %s702 = scalar_lea.vmem %s4, 8
  %v703 = vld [vmem:[%s702] sm:$0xff]
  %v705 = vsel %vm67, %v703, 0
  %707 = vmatpush.msra.mxu0 0.0
  %708 = vmatpush.msra.mxu0 0.0
  %709 = vmatpush.msra.mxu0 0.0
  %710 = vmatpush.msra.mxu0 0.0
  %711 = vmatpush.msra.mxu0 0.0
  %712 = vmatpush.msra.mxu0 0.0
  %713 = vmatpush.msra.mxu0 0.0
  %714 = vmatpush.msra.mxu0 0.0
  %715 = vmatpush.msra.mxu0 0.0
  %716 = vmatpush.msra.mxu0 0.0
  %717 = vmatpush.msra.mxu0 0.0
  %718 = vmatpush.msra.mxu0 0.0
  %719 = vmatpush.msra.mxu0 0.0
  %720 = vmatpush.msra.mxu0 0.0
  %721 = vmatpush.msra.mxu0 0.0
  %722 = vmatpush.msra.mxu0 %v700
  %723 = vmatmul.f32.gmra.mxu0 %v705
  %v724 = vpop.f32.mrf.mxu0
  %v725 = vadd.f32 0.0, %v724
  %726 = vdwg.mxu0
  %727 = vmatpush.msra.mxu0 0.0
  %728 = vmatpush.msra.mxu0 0.0
  %729 = vmatpush.msra.mxu0 0.0
  %730 = vmatpush.msra.mxu0 0.0
  %731 = vmatpush.msra.mxu0 0.0
  %732 = vmatpush.msra.mxu0 0.0
  %733 = vmatpush.msra.mxu0 0.0
  %734 = vmatpush.msra.mxu0 0.0
  %735 = vmatpush.msra.mxu0 0.0
  %736 = vmatpush.msra.mxu0 0.0
  %737 = vmatpush.msra.mxu0 0.0
  %738 = vmatpush.msra.mxu0 0.0
  %739 = vmatpush.msra.mxu0 0.0
  %740 = vmatpush.msra.mxu0 0.0
  %741 = vmatpush.msra.mxu0 0.0
  %742 = vmatpush.msra.mxu0 %v701
  %743 = vmatmul.f32.gmra.mxu0 %v705
  %v744 = vpop.f32.mrf.mxu0
  %v745 = vadd.f32 0.0, %v744
  %746 = vdwg.mxu0
  %v748 = vsel %vm67, %v693, 0
  %750 = vmatpush.msra.mxu0 0.0
  %751 = vmatpush.msra.mxu0 0.0
  %752 = vmatpush.msra.mxu0 0.0
  %753 = vmatpush.msra.mxu0 0.0
  %754 = vmatpush.msra.mxu0 0.0
  %755 = vmatpush.msra.mxu0 0.0
  %756 = vmatpush.msra.mxu0 0.0
  %757 = vmatpush.msra.mxu0 0.0
  %758 = vmatpush.msra.mxu0 0.0
  %759 = vmatpush.msra.mxu0 0.0
  %760 = vmatpush.msra.mxu0 0.0
  %761 = vmatpush.msra.mxu0 0.0
  %762 = vmatpush.msra.mxu0 0.0
  %763 = vmatpush.msra.mxu0 0.0
  %764 = vmatpush.msra.mxu0 0.0
  %765 = vmatpush.msra.mxu0 %v691
  %766 = vmatmul.f32.gmra.mxu0 %v748
  %v767 = vpop.f32.mrf.mxu0
  %v768 = vadd.f32 %v725, %v767
  %769 = vdwg.mxu0
  %770 = vmatpush.msra.mxu0 0.0
  %771 = vmatpush.msra.mxu0 0.0
  %772 = vmatpush.msra.mxu0 0.0
  %773 = vmatpush.msra.mxu0 0.0
  %774 = vmatpush.msra.mxu0 0.0
  %775 = vmatpush.msra.mxu0 0.0
  %776 = vmatpush.msra.mxu0 0.0
  %777 = vmatpush.msra.mxu0 0.0
  %778 = vmatpush.msra.mxu0 0.0
  %779 = vmatpush.msra.mxu0 0.0
  %780 = vmatpush.msra.mxu0 0.0
  %781 = vmatpush.msra.mxu0 0.0
  %782 = vmatpush.msra.mxu0 0.0
  %783 = vmatpush.msra.mxu0 0.0
  %784 = vmatpush.msra.mxu0 0.0
  %785 = vmatpush.msra.mxu0 %v692
  %786 = vmatmul.f32.gmra.mxu0 %v748
  %v787 = vpop.f32.mrf.mxu0
  %v788 = vadd.f32 %v745, %v787
  %789 = vdwg.mxu0
  %790 = vrot.lane.b32.xlu0 %v683, 15
  %v791 = vpop.permute.xlu0 %790
  %792 = vrot.lane.b32.xlu0 %v684, 15
  %v793 = vpop.permute.xlu0 %792
  %v794 = vsel %vm158, %v791, %v793
  %v795 = vsel %vm158, %v793, %v791
  %v796 = vmul.f32 %v795, %v164
  %v797 = vmul.f32 %v794, %v165
  %s798 = scalar_lea.vmem %s4, 16
  %v799 = vld [vmem:[%s798] sm:$0xff]
  %v801 = vsel %vm67, %v799, 0
  %803 = vmatpush.msra.mxu0 0.0
  %804 = vmatpush.msra.mxu0 0.0
  %805 = vmatpush.msra.mxu0 0.0
  %806 = vmatpush.msra.mxu0 0.0
  %807 = vmatpush.msra.mxu0 0.0
  %808 = vmatpush.msra.mxu0 0.0
  %809 = vmatpush.msra.mxu0 0.0
  %810 = vmatpush.msra.mxu0 0.0
  %811 = vmatpush.msra.mxu0 0.0
  %812 = vmatpush.msra.mxu0 0.0
  %813 = vmatpush.msra.mxu0 0.0
  %814 = vmatpush.msra.mxu0 0.0
  %815 = vmatpush.msra.mxu0 0.0
  %816 = vmatpush.msra.mxu0 0.0
  %817 = vmatpush.msra.mxu0 0.0
  %818 = vmatpush.msra.mxu0 %v796
  %819 = vmatmul.f32.gmra.mxu0 %v801
  %v820 = vpop.f32.mrf.mxu0
  %v821 = vadd.f32 0.0, %v820
  %822 = vdwg.mxu0
  %823 = vmatpush.msra.mxu0 0.0
  %824 = vmatpush.msra.mxu0 0.0
  %825 = vmatpush.msra.mxu0 0.0
  %826 = vmatpush.msra.mxu0 0.0
  %827 = vmatpush.msra.mxu0 0.0
  %828 = vmatpush.msra.mxu0 0.0
  %829 = vmatpush.msra.mxu0 0.0
  %830 = vmatpush.msra.mxu0 0.0
  %831 = vmatpush.msra.mxu0 0.0
  %832 = vmatpush.msra.mxu0 0.0
  %833 = vmatpush.msra.mxu0 0.0
  %834 = vmatpush.msra.mxu0 0.0
  %835 = vmatpush.msra.mxu0 0.0
  %836 = vmatpush.msra.mxu0 0.0
  %837 = vmatpush.msra.mxu0 0.0
  %838 = vmatpush.msra.mxu0 %v797
  %839 = vmatmul.f32.gmra.mxu0 %v801
  %v840 = vpop.f32.mrf.mxu0
  %v841 = vadd.f32 0.0, %v840
  %842 = vdwg.mxu0
  %v843 = vadd.f32 %v768, %v821
  %v844 = vadd.f32 %v788, %v841
  %845 = vrot.lane.b32.xlu0 %v683, 1
  %v846 = vpop.permute.xlu0 %845
  %847 = vrot.lane.b32.xlu0 %v684, 1
  %v848 = vpop.permute.xlu0 %847
  %v849 = vsel %vm221, %v846, %v848
  %v850 = vsel %vm221, %v848, %v846
  %v851 = vmul.f32 %v850, %v227
  %v852 = vmul.f32 %v849, %v228
  %s853 = scalar_lea.vmem %s4, 24
  %v854 = vld [vmem:[%s853] sm:$0xff]
  %v856 = vsel %vm67, %v854, 0
  %858 = vmatpush.msra.mxu0 0.0
  %859 = vmatpush.msra.mxu0 0.0
  %860 = vmatpush.msra.mxu0 0.0
  %861 = vmatpush.msra.mxu0 0.0
  %862 = vmatpush.msra.mxu0 0.0
  %863 = vmatpush.msra.mxu0 0.0
  %864 = vmatpush.msra.mxu0 0.0
  %865 = vmatpush.msra.mxu0 0.0
  %866 = vmatpush.msra.mxu0 0.0
  %867 = vmatpush.msra.mxu0 0.0
  %868 = vmatpush.msra.mxu0 0.0
  %869 = vmatpush.msra.mxu0 0.0
  %870 = vmatpush.msra.mxu0 0.0
  %871 = vmatpush.msra.mxu0 0.0
  %872 = vmatpush.msra.mxu0 0.0
  %873 = vmatpush.msra.mxu0 %v851
  %874 = vmatmul.f32.gmra.mxu0 %v856
  %v875 = vpop.f32.mrf.mxu0
  %v876 = vadd.f32 0.0, %v875
  %877 = vdwg.mxu0
  %878 = vmatpush.msra.mxu0 0.0
  %879 = vmatpush.msra.mxu0 0.0
  %880 = vmatpush.msra.mxu0 0.0
  %881 = vmatpush.msra.mxu0 0.0
  %882 = vmatpush.msra.mxu0 0.0
  %883 = vmatpush.msra.mxu0 0.0
  %884 = vmatpush.msra.mxu0 0.0
  %885 = vmatpush.msra.mxu0 0.0
  %886 = vmatpush.msra.mxu0 0.0
  %887 = vmatpush.msra.mxu0 0.0
  %888 = vmatpush.msra.mxu0 0.0
  %889 = vmatpush.msra.mxu0 0.0
  %890 = vmatpush.msra.mxu0 0.0
  %891 = vmatpush.msra.mxu0 0.0
  %892 = vmatpush.msra.mxu0 0.0
  %893 = vmatpush.msra.mxu0 %v852
  %894 = vmatmul.f32.gmra.mxu0 %v856
  %v895 = vpop.f32.mrf.mxu0
  %v896 = vadd.f32 0.0, %v895
  %897 = vdwg.mxu0
  %v898 = vadd.f32 %v843, %v876
  %v899 = vadd.f32 %v844, %v896
  %s900 = scalar_lea.vmem %s4, 32
  %v901 = vld [vmem:[%s900] sm:$0xff]
  %v903 = vsel %vm67, %v901, 0
  %905 = vmatpush.msra.mxu0 0.0
  %906 = vmatpush.msra.mxu0 0.0
  %907 = vmatpush.msra.mxu0 0.0
  %908 = vmatpush.msra.mxu0 0.0
  %909 = vmatpush.msra.mxu0 0.0
  %910 = vmatpush.msra.mxu0 0.0
  %911 = vmatpush.msra.mxu0 0.0
  %912 = vmatpush.msra.mxu0 0.0
  %913 = vmatpush.msra.mxu0 0.0
  %914 = vmatpush.msra.mxu0 0.0
  %915 = vmatpush.msra.mxu0 0.0
  %916 = vmatpush.msra.mxu0 0.0
  %917 = vmatpush.msra.mxu0 0.0
  %918 = vmatpush.msra.mxu0 0.0
  %919 = vmatpush.msra.mxu0 0.0
  %920 = vmatpush.msra.mxu0 %v683
  %921 = vmatmul.f32.gmra.mxu0 %v903
  %v922 = vpop.f32.mrf.mxu0
  %v923 = vadd.f32 0.0, %v922
  %924 = vdwg.mxu0
  %925 = vmatpush.msra.mxu0 0.0
  %926 = vmatpush.msra.mxu0 0.0
  %927 = vmatpush.msra.mxu0 0.0
  %928 = vmatpush.msra.mxu0 0.0
  %929 = vmatpush.msra.mxu0 0.0
  %930 = vmatpush.msra.mxu0 0.0
  %931 = vmatpush.msra.mxu0 0.0
  %932 = vmatpush.msra.mxu0 0.0
  %933 = vmatpush.msra.mxu0 0.0
  %934 = vmatpush.msra.mxu0 0.0
  %935 = vmatpush.msra.mxu0 0.0
  %936 = vmatpush.msra.mxu0 0.0
  %937 = vmatpush.msra.mxu0 0.0
  %938 = vmatpush.msra.mxu0 0.0
  %939 = vmatpush.msra.mxu0 0.0
  %940 = vmatpush.msra.mxu0 %v684
  %941 = vmatmul.f32.gmra.mxu0 %v903
  %v942 = vpop.f32.mrf.mxu0
  %v943 = vadd.f32 0.0, %v942
  %944 = vdwg.mxu0
  %v945 = vadd.f32 %v898, %v923
  %v946 = vadd.f32 %v899, %v943
  %947 = vrot.lane.b32.xlu0 %v683, 127
  %v948 = vpop.permute.xlu0 %947
  %949 = vrot.lane.b32.xlu0 %v684, 127
  %v950 = vpop.permute.xlu0 %949
  %v951 = vsel %vm331, %v948, %v950
  %v952 = vsel %vm331, %v950, %v948
  %v953 = vmul.f32 %v951, %v337
  %v954 = vmul.f32 %v952, %v338
  %s955 = scalar_lea.vmem %s4, 40
  %v956 = vld [vmem:[%s955] sm:$0xff]
  %v958 = vsel %vm67, %v956, 0
  %960 = vmatpush.msra.mxu0 0.0
  %961 = vmatpush.msra.mxu0 0.0
  %962 = vmatpush.msra.mxu0 0.0
  %963 = vmatpush.msra.mxu0 0.0
  %964 = vmatpush.msra.mxu0 0.0
  %965 = vmatpush.msra.mxu0 0.0
  %966 = vmatpush.msra.mxu0 0.0
  %967 = vmatpush.msra.mxu0 0.0
  %968 = vmatpush.msra.mxu0 0.0
  %969 = vmatpush.msra.mxu0 0.0
  %970 = vmatpush.msra.mxu0 0.0
  %971 = vmatpush.msra.mxu0 0.0
  %972 = vmatpush.msra.mxu0 0.0
  %973 = vmatpush.msra.mxu0 0.0
  %974 = vmatpush.msra.mxu0 0.0
  %975 = vmatpush.msra.mxu0 %v953
  %976 = vmatmul.f32.gmra.mxu0 %v958
  %v977 = vpop.f32.mrf.mxu0
  %v978 = vadd.f32 0.0, %v977
  %979 = vdwg.mxu0
  %980 = vmatpush.msra.mxu0 0.0
  %981 = vmatpush.msra.mxu0 0.0
  %982 = vmatpush.msra.mxu0 0.0
  %983 = vmatpush.msra.mxu0 0.0
  %984 = vmatpush.msra.mxu0 0.0
  %985 = vmatpush.msra.mxu0 0.0
  %986 = vmatpush.msra.mxu0 0.0
  %987 = vmatpush.msra.mxu0 0.0
  %988 = vmatpush.msra.mxu0 0.0
  %989 = vmatpush.msra.mxu0 0.0
  %990 = vmatpush.msra.mxu0 0.0
  %991 = vmatpush.msra.mxu0 0.0
  %992 = vmatpush.msra.mxu0 0.0
  %993 = vmatpush.msra.mxu0 0.0
  %994 = vmatpush.msra.mxu0 0.0
  %995 = vmatpush.msra.mxu0 %v954
  %996 = vmatmul.f32.gmra.mxu0 %v958
  %v997 = vpop.f32.mrf.mxu0
  %v998 = vadd.f32 0.0, %v997
  %999 = vdwg.mxu0
  %v1000 = vadd.f32 %v945, %v978
  %v1001 = vadd.f32 %v946, %v998
  %1002 = vrot.lane.b32.xlu0 %v683, 113
  %v1003 = vpop.permute.xlu0 %1002
  %1004 = vrot.lane.b32.xlu0 %v684, 113
  %v1005 = vpop.permute.xlu0 %1004
  %v1006 = vsel %vm394, %v1003, %v1005
  %v1007 = vsel %vm394, %v1005, %v1003
  %v1008 = vmul.f32 %v1006, %v400
  %v1009 = vmul.f32 %v1007, %v401
  %s1010 = scalar_lea.vmem %s4, 48
  %v1011 = vld [vmem:[%s1010] sm:$0xff]
  %v1013 = vsel %vm67, %v1011, 0
  %1015 = vmatpush.msra.mxu0 0.0
  %1016 = vmatpush.msra.mxu0 0.0
  %1017 = vmatpush.msra.mxu0 0.0
  %1018 = vmatpush.msra.mxu0 0.0
  %1019 = vmatpush.msra.mxu0 0.0
  %1020 = vmatpush.msra.mxu0 0.0
  %1021 = vmatpush.msra.mxu0 0.0
  %1022 = vmatpush.msra.mxu0 0.0
  %1023 = vmatpush.msra.mxu0 0.0
  %1024 = vmatpush.msra.mxu0 0.0
  %1025 = vmatpush.msra.mxu0 0.0
  %1026 = vmatpush.msra.mxu0 0.0
  %1027 = vmatpush.msra.mxu0 0.0
  %1028 = vmatpush.msra.mxu0 0.0
  %1029 = vmatpush.msra.mxu0 0.0
  %1030 = vmatpush.msra.mxu0 %v1008
  %1031 = vmatmul.f32.gmra.mxu0 %v1013
  %v1032 = vpop.f32.mrf.mxu0
  %v1033 = vadd.f32 0.0, %v1032
  %1034 = vdwg.mxu0
  %1035 = vmatpush.msra.mxu0 0.0
  %1036 = vmatpush.msra.mxu0 0.0
  %1037 = vmatpush.msra.mxu0 0.0
  %1038 = vmatpush.msra.mxu0 0.0
  %1039 = vmatpush.msra.mxu0 0.0
  %1040 = vmatpush.msra.mxu0 0.0
  %1041 = vmatpush.msra.mxu0 0.0
  %1042 = vmatpush.msra.mxu0 0.0
  %1043 = vmatpush.msra.mxu0 0.0
  %1044 = vmatpush.msra.mxu0 0.0
  %1045 = vmatpush.msra.mxu0 0.0
  %1046 = vmatpush.msra.mxu0 0.0
  %1047 = vmatpush.msra.mxu0 0.0
  %1048 = vmatpush.msra.mxu0 0.0
  %1049 = vmatpush.msra.mxu0 0.0
  %1050 = vmatpush.msra.mxu0 %v1009
  %1051 = vmatmul.f32.gmra.mxu0 %v1013
  %v1052 = vpop.f32.mrf.mxu0
  %v1053 = vadd.f32 0.0, %v1052
  %1054 = vdwg.mxu0
  %v1055 = vadd.f32 %v1000, %v1033
  %v1056 = vadd.f32 %v1001, %v1053
  %1057 = vrot.lane.b32.xlu0 %v683, 112
  %v1058 = vpop.permute.xlu0 %1057
  %1059 = vrot.lane.b32.xlu0 %v684, 112
  %v1060 = vpop.permute.xlu0 %1059
  %v1061 = vsel %vm457, %v1058, %v1060
  %v1062 = vsel %vm457, %v1060, %v1058
  %v1063 = vmul.f32 %v1061, %v463
  %v1064 = vmul.f32 %v1062, %v464
  %s1065 = scalar_lea.vmem %s4, 56
  %v1066 = vld [vmem:[%s1065] sm:$0xff]
  %v1068 = vsel %vm67, %v1066, 0
  %1070 = vmatpush.msra.mxu0 0.0
  %1071 = vmatpush.msra.mxu0 0.0
  %1072 = vmatpush.msra.mxu0 0.0
  %1073 = vmatpush.msra.mxu0 0.0
  %1074 = vmatpush.msra.mxu0 0.0
  %1075 = vmatpush.msra.mxu0 0.0
  %1076 = vmatpush.msra.mxu0 0.0
  %1077 = vmatpush.msra.mxu0 0.0
  %1078 = vmatpush.msra.mxu0 0.0
  %1079 = vmatpush.msra.mxu0 0.0
  %1080 = vmatpush.msra.mxu0 0.0
  %1081 = vmatpush.msra.mxu0 0.0
  %1082 = vmatpush.msra.mxu0 0.0
  %1083 = vmatpush.msra.mxu0 0.0
  %1084 = vmatpush.msra.mxu0 0.0
  %1085 = vmatpush.msra.mxu0 %v1063
  %1086 = vmatmul.f32.gmra.mxu0 %v1068
  %v1087 = vpop.f32.mrf.mxu0
  %v1088 = vadd.f32 0.0, %v1087
  %1089 = vdwg.mxu0
  %1090 = vmatpush.msra.mxu0 0.0
  %1091 = vmatpush.msra.mxu0 0.0
  %1092 = vmatpush.msra.mxu0 0.0
  %1093 = vmatpush.msra.mxu0 0.0
  %1094 = vmatpush.msra.mxu0 0.0
  %1095 = vmatpush.msra.mxu0 0.0
  %1096 = vmatpush.msra.mxu0 0.0
  %1097 = vmatpush.msra.mxu0 0.0
  %1098 = vmatpush.msra.mxu0 0.0
  %1099 = vmatpush.msra.mxu0 0.0
  %1100 = vmatpush.msra.mxu0 0.0
  %1101 = vmatpush.msra.mxu0 0.0
  %1102 = vmatpush.msra.mxu0 0.0
  %1103 = vmatpush.msra.mxu0 0.0
  %1104 = vmatpush.msra.mxu0 0.0
  %1105 = vmatpush.msra.mxu0 %v1064
  %1106 = vmatmul.f32.gmra.mxu0 %v1068
  %v1107 = vpop.f32.mrf.mxu0
  %v1108 = vadd.f32 0.0, %v1107
  %1109 = vdwg.mxu0
  %v1110 = vadd.f32 %v1055, %v1088
  %v1111 = vadd.f32 %v1056, %v1108
  %1112 = vrot.lane.b32.xlu0 %v683, 111
  %v1113 = vpop.permute.xlu0 %1112
  %1114 = vrot.lane.b32.xlu0 %v684, 111
  %v1115 = vpop.permute.xlu0 %1114
  %v1116 = vsel %vm520, %v1113, %v1115
  %v1117 = vsel %vm520, %v1115, %v1113
  %v1118 = vmul.f32 %v1116, %v526
  %v1119 = vmul.f32 %v1117, %v527
  %s1120 = scalar_lea.vmem %s4, 64
  %v1121 = vld [vmem:[%s1120] sm:$0xff]
  %v1123 = vsel %vm67, %v1121, 0
  %1125 = vmatpush.msra.mxu0 0.0
  %1126 = vmatpush.msra.mxu0 0.0
  %1127 = vmatpush.msra.mxu0 0.0
  %1128 = vmatpush.msra.mxu0 0.0
  %1129 = vmatpush.msra.mxu0 0.0
  %1130 = vmatpush.msra.mxu0 0.0
  %1131 = vmatpush.msra.mxu0 0.0
  %1132 = vmatpush.msra.mxu0 0.0
  %1133 = vmatpush.msra.mxu0 0.0
  %1134 = vmatpush.msra.mxu0 0.0
  %1135 = vmatpush.msra.mxu0 0.0
  %1136 = vmatpush.msra.mxu0 0.0
  %1137 = vmatpush.msra.mxu0 0.0
  %1138 = vmatpush.msra.mxu0 0.0
  %1139 = vmatpush.msra.mxu0 0.0
  %1140 = vmatpush.msra.mxu0 %v1118
  %1141 = vmatmul.f32.gmra.mxu0 %v1123
  %v1142 = vpop.f32.mrf.mxu0
  %v1143 = vadd.f32 0.0, %v1142
  %1144 = vdwg.mxu0
  %1145 = vmatpush.msra.mxu0 0.0
  %1146 = vmatpush.msra.mxu0 0.0
  %1147 = vmatpush.msra.mxu0 0.0
  %1148 = vmatpush.msra.mxu0 0.0
  %1149 = vmatpush.msra.mxu0 0.0
  %1150 = vmatpush.msra.mxu0 0.0
  %1151 = vmatpush.msra.mxu0 0.0
  %1152 = vmatpush.msra.mxu0 0.0
  %1153 = vmatpush.msra.mxu0 0.0
  %1154 = vmatpush.msra.mxu0 0.0
  %1155 = vmatpush.msra.mxu0 0.0
  %1156 = vmatpush.msra.mxu0 0.0
  %1157 = vmatpush.msra.mxu0 0.0
  %1158 = vmatpush.msra.mxu0 0.0
  %1159 = vmatpush.msra.mxu0 0.0
  %1160 = vmatpush.msra.mxu0 %v1119
  %1161 = vmatmul.f32.gmra.mxu0 %v1123
  %v1162 = vpop.f32.mrf.mxu0
  %v1163 = vadd.f32 0.0, %v1162
  %1164 = vdwg.mxu0
  %v1165 = vadd.f32 %v1110, %v1143
  %v1166 = vadd.f32 %v1111, %v1163
  %v1167 = vld [vmem:[%s5] sm:$0xff]
  %1169 = vset.pattern.permute.xlu0 0
  %1170 = vperm.xlu0 %1169, %v1167
  %v1171 = vpop.permute.xlu0 %1170
  %v1173 = vadd.f32 %v1165, %v1171
  %v1174 = vadd.f32 %v1166, %v1171
  %v1175 = vmin.f32 %v1173, %v1174
  %1176 = vmin.xlane.f32.xlu0 %v1175
  %v1177 = vpop.xlane.xlu0 %1176
  %v1178 = vmax.f32 %v1173, %v1174
  %1179 = vmax.xlane.f32.xlu0 %v1178
  %v1180 = vpop.xlane.xlu0 %1179
  %v1181 = vsel %vm593, %v1177, inf
  %v1182 = vrot.slane %v1181, 4
  %v1183 = vmin.f32 %v1181, %v1182
  %v1184 = vrot.slane %v1183, 2
  %v1185 = vmin.f32 %v1183, %v1184
  %v1186 = vrot.slane %v1185, 1
  %v1187 = vmin.f32 %v1185, %v1186
  %s1188 = vtos %v1187
  %v1189 = vsel %vm602, %v1177, inf
  %v1190 = vrot.slane %v1189, 4
  %v1191 = vmin.f32 %v1189, %v1190
  %v1192 = vrot.slane %v1191, 2
  %v1193 = vmin.f32 %v1191, %v1192
  %v1194 = vrot.slane %v1193, 1
  %v1195 = vmin.f32 %v1193, %v1194
  %s1196 = vtos %v1195
  %v1197 = vsel %vm593, %v1180, -inf
  %v1198 = vrot.slane %v1197, 4
  %v1199 = vmax.f32 %v1197, %v1198
  %v1200 = vrot.slane %v1199, 2
  %v1201 = vmax.f32 %v1199, %v1200
  %v1202 = vrot.slane %v1201, 1
  %v1203 = vmax.f32 %v1201, %v1202
  %s1204 = vtos %v1203
  %v1205 = vsel %vm602, %v1180, -inf
  %v1206 = vrot.slane %v1205, 4
  %v1207 = vmax.f32 %v1205, %v1206
  %v1208 = vrot.slane %v1207, 2
  %v1209 = vmax.f32 %v1207, %v1208
  %v1210 = vrot.slane %v1209, 1
  %v1211 = vmax.f32 %v1209, %v1210
  %s1212 = vtos %v1211
  %s1213 = ssub.f32 %s1188, %s601
  %s1214 = smul.f32 %s1213, 0.01
  %s1215 = sadd.f32 %s601, %s1214
  %s1216 = ssub.f32 %s1196, %s610
  %s1217 = smul.f32 %s1216, 0.01
  %s1218 = sadd.f32 %s610, %s1217
  %s1219 = ssub.f32 %s1204, %s618
  %s1220 = smul.f32 %s1219, 0.01
  %s1221 = sadd.f32 %s618, %s1220
  %s1222 = ssub.f32 %s1212, %s626
  %s1223 = smul.f32 %s1222, 0.01
  %s1224 = sadd.f32 %s626, %s1223
  %s1225 = smin.f32 %s1215, 0.0
  %s1226 = smax.f32 %s1221, 0.0
  %s1227 = ssub.f32 %s1226, %s1225
  %v1228 = vrcp.pop 255.0
  %v1229 = vmul.f32 255.0, %v1228
  %v1230 = vsub.f32 1.0, %v1229
  %v1231 = vmul.f32 %v1228, %v1230
  %v1232 = vadd.f32 %v1228, %v1231
  %vm1233 = vweird.f32 %v1228
  %v1234 = vsel %vm1233, %v1228, %v1232
  %s1235 = vtos %v1234
  %s1236 = smul.f32 %s1227, %s1235
  %s1237 = smax.f32 %s1236, 1.1920929e-07
  %s1238 = smin.f32 %s1218, 0.0
  %s1239 = smax.f32 %s1224, 0.0
  %s1240 = ssub.f32 %s1239, %s1238
  %v1241 = vrcp.pop 255.0
  %v1242 = vmul.f32 255.0, %v1241
  %v1243 = vsub.f32 1.0, %v1242
  %v1244 = vmul.f32 %v1241, %v1243
  %v1245 = vadd.f32 %v1241, %v1244
  %vm1246 = vweird.f32 %v1241
  %v1247 = vsel %vm1246, %v1241, %v1245
  %s1248 = vtos %v1247
  %s1249 = smul.f32 %s1240, %s1248
  %s1250 = smax.f32 %s1249, 1.1920929e-07
  %v1251 = vstv %s1237
  %v1252 = vstv %s1250
  %v1253 = vsel %vm593, %v1251, %v1252
  %1255 = vset.pattern.permute.xlu0 0
  %1256 = vperm.xlu0 %1255, %v1253
  %v1257 = vpop.permute.xlu0 %1256
  %v1259 = vrcp.pop %v1257
  %v1260 = vmul.f32 %v1257, %v1259
  %v1261 = vsub.f32 1.0, %v1260
  %v1262 = vmul.f32 %v1259, %v1261
  %v1263 = vadd.f32 %v1259, %v1262
  %vm1264 = vweird.f32 %v1257
  %vm1265 = vweird.f32 %v1259
  %vm1266 = vmor %vm1264, %vm1265
  %v1267 = vsel %vm1266, %v1259, %v1263
  %v1268 = vand.u32 2147483647, %v1257
  %vm1269 = vcmp.eq.f32.partialorder %v1268, 8.507059e+37
  %v1270 = vand.u32 %v1257, 2147483648
  %v1271 = vor.u32 1.1754944e-38, %v1270
  %v1272 = vsel %vm1269, %v1271, %v1267
  %v1273 = vmul.f32 %v1173, %v1272
  %v1274 = vmul.f32 %v1174, %v1272
  %v1275 = vround.ne.pseudo %v1273
  %v1276 = vround.ne.pseudo %v1274
  %v1277 = vmax.f32 %v1275, -128.0
  %v1278 = vmax.f32 %v1276, -128.0
  %v1279 = vmin.f32 %v1277, 127.0
  %v1280 = vmin.f32 %v1278, 127.0
  %v1281 = vmul.f32 %v1279, %v1257
  %v1282 = vmul.f32 %v1280, %v1257
  %1283 = vrot.lane.b32.xlu0 %v1281, 17
  %v1284 = vpop.permute.xlu0 %1283
  %1285 = vrot.lane.b32.xlu0 %v1282, 17
  %v1286 = vpop.permute.xlu0 %1285
  %v1287 = vsel %vm37, %v1284, %v1286
  %v1288 = vsel %vm37, %v1286, %v1284
  %v1289 = vmul.f32 %v1288, %v42
  %v1290 = vmul.f32 %v1287, %v43
  %v1291 = vld [vmem:[%s6] sm:$0xff]
  %1292 = vrot.lane.b32.xlu0 %v1281, 16
  %v1293 = vpop.permute.xlu0 %1292
  %1294 = vrot.lane.b32.xlu0 %v1282, 16
  %v1295 = vpop.permute.xlu0 %1294
  %v1296 = vsel %vm53, %v1293, %v1295
  %v1297 = vsel %vm53, %v1295, %v1293
  %v1298 = vmul.f32 %v1297, %v59
  %v1299 = vmul.f32 %v1296, %v60
  %s1300 = scalar_lea.vmem %s6, 8
  %v1301 = vld [vmem:[%s1300] sm:$0xff]
  %v1303 = vsel %vm67, %v1301, 0
  %1305 = vmatpush.msra.mxu0 0.0
  %1306 = vmatpush.msra.mxu0 0.0
  %1307 = vmatpush.msra.mxu0 0.0
  %1308 = vmatpush.msra.mxu0 0.0
  %1309 = vmatpush.msra.mxu0 0.0
  %1310 = vmatpush.msra.mxu0 0.0
  %1311 = vmatpush.msra.mxu0 0.0
  %1312 = vmatpush.msra.mxu0 0.0
  %1313 = vmatpush.msra.mxu0 0.0
  %1314 = vmatpush.msra.mxu0 0.0
  %1315 = vmatpush.msra.mxu0 0.0
  %1316 = vmatpush.msra.mxu0 0.0
  %1317 = vmatpush.msra.mxu0 0.0
  %1318 = vmatpush.msra.mxu0 0.0
  %1319 = vmatpush.msra.mxu0 0.0
  %1320 = vmatpush.msra.mxu0 %v1298
  %1321 = vmatmul.f32.gmra.mxu0 %v1303
  %v1322 = vpop.f32.mrf.mxu0
  %v1323 = vadd.f32 0.0, %v1322
  %1324 = vdwg.mxu0
  %1325 = vmatpush.msra.mxu0 0.0
  %1326 = vmatpush.msra.mxu0 0.0
  %1327 = vmatpush.msra.mxu0 0.0
  %1328 = vmatpush.msra.mxu0 0.0
  %1329 = vmatpush.msra.mxu0 0.0
  %1330 = vmatpush.msra.mxu0 0.0
  %1331 = vmatpush.msra.mxu0 0.0
  %1332 = vmatpush.msra.mxu0 0.0
  %1333 = vmatpush.msra.mxu0 0.0
  %1334 = vmatpush.msra.mxu0 0.0
  %1335 = vmatpush.msra.mxu0 0.0
  %1336 = vmatpush.msra.mxu0 0.0
  %1337 = vmatpush.msra.mxu0 0.0
  %1338 = vmatpush.msra.mxu0 0.0
  %1339 = vmatpush.msra.mxu0 0.0
  %1340 = vmatpush.msra.mxu0 %v1299
  %1341 = vmatmul.f32.gmra.mxu0 %v1303
  %v1342 = vpop.f32.mrf.mxu0
  %v1343 = vadd.f32 0.0, %v1342
  %1344 = vdwg.mxu0
  %v1346 = vsel %vm67, %v1291, 0
  %1348 = vmatpush.msra.mxu0 0.0
  %1349 = vmatpush.msra.mxu0 0.0
  %1350 = vmatpush.msra.mxu0 0.0
  %1351 = vmatpush.msra.mxu0 0.0
  %1352 = vmatpush.msra.mxu0 0.0
  %1353 = vmatpush.msra.mxu0 0.0
  %1354 = vmatpush.msra.mxu0 0.0
  %1355 = vmatpush.msra.mxu0 0.0
  %1356 = vmatpush.msra.mxu0 0.0
  %1357 = vmatpush.msra.mxu0 0.0
  %1358 = vmatpush.msra.mxu0 0.0
  %1359 = vmatpush.msra.mxu0 0.0
  %1360 = vmatpush.msra.mxu0 0.0
  %1361 = vmatpush.msra.mxu0 0.0
  %1362 = vmatpush.msra.mxu0 0.0
  %1363 = vmatpush.msra.mxu0 %v1289
  %1364 = vmatmul.f32.gmra.mxu0 %v1346
  %v1365 = vpop.f32.mrf.mxu0
  %v1366 = vadd.f32 %v1323, %v1365
  %1367 = vdwg.mxu0
  %1368 = vmatpush.msra.mxu0 0.0
  %1369 = vmatpush.msra.mxu0 0.0
  %1370 = vmatpush.msra.mxu0 0.0
  %1371 = vmatpush.msra.mxu0 0.0
  %1372 = vmatpush.msra.mxu0 0.0
  %1373 = vmatpush.msra.mxu0 0.0
  %1374 = vmatpush.msra.mxu0 0.0
  %1375 = vmatpush.msra.mxu0 0.0
  %1376 = vmatpush.msra.mxu0 0.0
  %1377 = vmatpush.msra.mxu0 0.0
  %1378 = vmatpush.msra.mxu0 0.0
  %1379 = vmatpush.msra.mxu0 0.0
  %1380 = vmatpush.msra.mxu0 0.0
  %1381 = vmatpush.msra.mxu0 0.0
  %1382 = vmatpush.msra.mxu0 0.0
  %1383 = vmatpush.msra.mxu0 %v1290
  %1384 = vmatmul.f32.gmra.mxu0 %v1346
  %v1385 = vpop.f32.mrf.mxu0
  %v1386 = vadd.f32 %v1343, %v1385
  %1387 = vdwg.mxu0
  %1388 = vrot.lane.b32.xlu0 %v1281, 15
  %v1389 = vpop.permute.xlu0 %1388
  %1390 = vrot.lane.b32.xlu0 %v1282, 15
  %v1391 = vpop.permute.xlu0 %1390
  %v1392 = vsel %vm158, %v1389, %v1391
  %v1393 = vsel %vm158, %v1391, %v1389
  %v1394 = vmul.f32 %v1393, %v164
  %v1395 = vmul.f32 %v1392, %v165
  %s1396 = scalar_lea.vmem %s6, 16
  %v1397 = vld [vmem:[%s1396] sm:$0xff]
  %v1399 = vsel %vm67, %v1397, 0
  %1401 = vmatpush.msra.mxu0 0.0
  %1402 = vmatpush.msra.mxu0 0.0
  %1403 = vmatpush.msra.mxu0 0.0
  %1404 = vmatpush.msra.mxu0 0.0
  %1405 = vmatpush.msra.mxu0 0.0
  %1406 = vmatpush.msra.mxu0 0.0
  %1407 = vmatpush.msra.mxu0 0.0
  %1408 = vmatpush.msra.mxu0 0.0
  %1409 = vmatpush.msra.mxu0 0.0
  %1410 = vmatpush.msra.mxu0 0.0
  %1411 = vmatpush.msra.mxu0 0.0
  %1412 = vmatpush.msra.mxu0 0.0
  %1413 = vmatpush.msra.mxu0 0.0
  %1414 = vmatpush.msra.mxu0 0.0
  %1415 = vmatpush.msra.mxu0 0.0
  %1416 = vmatpush.msra.mxu0 %v1394
  %1417 = vmatmul.f32.gmra.mxu0 %v1399
  %v1418 = vpop.f32.mrf.mxu0
  %v1419 = vadd.f32 0.0, %v1418
  %1420 = vdwg.mxu0
  %1421 = vmatpush.msra.mxu0 0.0
  %1422 = vmatpush.msra.mxu0 0.0
  %1423 = vmatpush.msra.mxu0 0.0
  %1424 = vmatpush.msra.mxu0 0.0
  %1425 = vmatpush.msra.mxu0 0.0
  %1426 = vmatpush.msra.mxu0 0.0
  %1427 = vmatpush.msra.mxu0 0.0
  %1428 = vmatpush.msra.mxu0 0.0
  %1429 = vmatpush.msra.mxu0 0.0
  %1430 = vmatpush.msra.mxu0 0.0
  %1431 = vmatpush.msra.mxu0 0.0
  %1432 = vmatpush.msra.mxu0 0.0
  %1433 = vmatpush.msra.mxu0 0.0
  %1434 = vmatpush.msra.mxu0 0.0
  %1435 = vmatpush.msra.mxu0 0.0
  %1436 = vmatpush.msra.mxu0 %v1395
  %1437 = vmatmul.f32.gmra.mxu0 %v1399
  %v1438 = vpop.f32.mrf.mxu0
  %v1439 = vadd.f32 0.0, %v1438
  %1440 = vdwg.mxu0
  %v1441 = vadd.f32 %v1366, %v1419
  %v1442 = vadd.f32 %v1386, %v1439
  %1443 = vrot.lane.b32.xlu0 %v1281, 1
  %v1444 = vpop.permute.xlu0 %1443
  %1445 = vrot.lane.b32.xlu0 %v1282, 1
  %v1446 = vpop.permute.xlu0 %1445
  %v1447 = vsel %vm221, %v1444, %v1446
  %v1448 = vsel %vm221, %v1446, %v1444
  %v1449 = vmul.f32 %v1448, %v227
  %v1450 = vmul.f32 %v1447, %v228
  %s1451 = scalar_lea.vmem %s6, 24
  %v1452 = vld [vmem:[%s1451] sm:$0xff]
  %v1454 = vsel %vm67, %v1452, 0
  %1456 = vmatpush.msra.mxu0 0.0
  %1457 = vmatpush.msra.mxu0 0.0
  %1458 = vmatpush.msra.mxu0 0.0
  %1459 = vmatpush.msra.mxu0 0.0
  %1460 = vmatpush.msra.mxu0 0.0
  %1461 = vmatpush.msra.mxu0 0.0
  %1462 = vmatpush.msra.mxu0 0.0
  %1463 = vmatpush.msra.mxu0 0.0
  %1464 = vmatpush.msra.mxu0 0.0
  %1465 = vmatpush.msra.mxu0 0.0
  %1466 = vmatpush.msra.mxu0 0.0
  %1467 = vmatpush.msra.mxu0 0.0
  %1468 = vmatpush.msra.mxu0 0.0
  %1469 = vmatpush.msra.mxu0 0.0
  %1470 = vmatpush.msra.mxu0 0.0
  %1471 = vmatpush.msra.mxu0 %v1449
  %1472 = vmatmul.f32.gmra.mxu0 %v1454
  %v1473 = vpop.f32.mrf.mxu0
  %v1474 = vadd.f32 0.0, %v1473
  %1475 = vdwg.mxu0
  %1476 = vmatpush.msra.mxu0 0.0
  %1477 = vmatpush.msra.mxu0 0.0
  %1478 = vmatpush.msra.mxu0 0.0
  %1479 = vmatpush.msra.mxu0 0.0
  %1480 = vmatpush.msra.mxu0 0.0
  %1481 = vmatpush.msra.mxu0 0.0
  %1482 = vmatpush.msra.mxu0 0.0
  %1483 = vmatpush.msra.mxu0 0.0
  %1484 = vmatpush.msra.mxu0 0.0
  %1485 = vmatpush.msra.mxu0 0.0
  %1486 = vmatpush.msra.mxu0 0.0
  %1487 = vmatpush.msra.mxu0 0.0
  %1488 = vmatpush.msra.mxu0 0.0
  %1489 = vmatpush.msra.mxu0 0.0
  %1490 = vmatpush.msra.mxu0 0.0
  %1491 = vmatpush.msra.mxu0 %v1450
  %1492 = vmatmul.f32.gmra.mxu0 %v1454
  %v1493 = vpop.f32.mrf.mxu0
  %v1494 = vadd.f32 0.0, %v1493
  %1495 = vdwg.mxu0
  %v1496 = vadd.f32 %v1441, %v1474
  %v1497 = vadd.f32 %v1442, %v1494
  %s1498 = scalar_lea.vmem %s6, 32
  %v1499 = vld [vmem:[%s1498] sm:$0xff]
  %v1501 = vsel %vm67, %v1499, 0
  %1503 = vmatpush.msra.mxu0 0.0
  %1504 = vmatpush.msra.mxu0 0.0
  %1505 = vmatpush.msra.mxu0 0.0
  %1506 = vmatpush.msra.mxu0 0.0
  %1507 = vmatpush.msra.mxu0 0.0
  %1508 = vmatpush.msra.mxu0 0.0
  %1509 = vmatpush.msra.mxu0 0.0
  %1510 = vmatpush.msra.mxu0 0.0
  %1511 = vmatpush.msra.mxu0 0.0
  %1512 = vmatpush.msra.mxu0 0.0
  %1513 = vmatpush.msra.mxu0 0.0
  %1514 = vmatpush.msra.mxu0 0.0
  %1515 = vmatpush.msra.mxu0 0.0
  %1516 = vmatpush.msra.mxu0 0.0
  %1517 = vmatpush.msra.mxu0 0.0
  %1518 = vmatpush.msra.mxu0 %v1281
  %1519 = vmatmul.f32.gmra.mxu0 %v1501
  %v1520 = vpop.f32.mrf.mxu0
  %v1521 = vadd.f32 0.0, %v1520
  %1522 = vdwg.mxu0
  %1523 = vmatpush.msra.mxu0 0.0
  %1524 = vmatpush.msra.mxu0 0.0
  %1525 = vmatpush.msra.mxu0 0.0
  %1526 = vmatpush.msra.mxu0 0.0
  %1527 = vmatpush.msra.mxu0 0.0
  %1528 = vmatpush.msra.mxu0 0.0
  %1529 = vmatpush.msra.mxu0 0.0
  %1530 = vmatpush.msra.mxu0 0.0
  %1531 = vmatpush.msra.mxu0 0.0
  %1532 = vmatpush.msra.mxu0 0.0
  %1533 = vmatpush.msra.mxu0 0.0
  %1534 = vmatpush.msra.mxu0 0.0
  %1535 = vmatpush.msra.mxu0 0.0
  %1536 = vmatpush.msra.mxu0 0.0
  %1537 = vmatpush.msra.mxu0 0.0
  %1538 = vmatpush.msra.mxu0 %v1282
  %1539 = vmatmul.f32.gmra.mxu0 %v1501
  %v1540 = vpop.f32.mrf.mxu0
  %v1541 = vadd.f32 0.0, %v1540
  %1542 = vdwg.mxu0
  %v1543 = vadd.f32 %v1496, %v1521
  %v1544 = vadd.f32 %v1497, %v1541
  %1545 = vrot.lane.b32.xlu0 %v1281, 127
  %v1546 = vpop.permute.xlu0 %1545
  %1547 = vrot.lane.b32.xlu0 %v1282, 127
  %v1548 = vpop.permute.xlu0 %1547
  %v1549 = vsel %vm331, %v1546, %v1548
  %v1550 = vsel %vm331, %v1548, %v1546
  %v1551 = vmul.f32 %v1549, %v337
  %v1552 = vmul.f32 %v1550, %v338
  %s1553 = scalar_lea.vmem %s6, 40
  %v1554 = vld [vmem:[%s1553] sm:$0xff]
  %v1556 = vsel %vm67, %v1554, 0
  %1558 = vmatpush.msra.mxu0 0.0
  %1559 = vmatpush.msra.mxu0 0.0
  %1560 = vmatpush.msra.mxu0 0.0
  %1561 = vmatpush.msra.mxu0 0.0
  %1562 = vmatpush.msra.mxu0 0.0
  %1563 = vmatpush.msra.mxu0 0.0
  %1564 = vmatpush.msra.mxu0 0.0
  %1565 = vmatpush.msra.mxu0 0.0
  %1566 = vmatpush.msra.mxu0 0.0
  %1567 = vmatpush.msra.mxu0 0.0
  %1568 = vmatpush.msra.mxu0 0.0
  %1569 = vmatpush.msra.mxu0 0.0
  %1570 = vmatpush.msra.mxu0 0.0
  %1571 = vmatpush.msra.mxu0 0.0
  %1572 = vmatpush.msra.mxu0 0.0
  %1573 = vmatpush.msra.mxu0 %v1551
  %1574 = vmatmul.f32.gmra.mxu0 %v1556
  %v1575 = vpop.f32.mrf.mxu0
  %v1576 = vadd.f32 0.0, %v1575
  %1577 = vdwg.mxu0
  %1578 = vmatpush.msra.mxu0 0.0
  %1579 = vmatpush.msra.mxu0 0.0
  %1580 = vmatpush.msra.mxu0 0.0
  %1581 = vmatpush.msra.mxu0 0.0
  %1582 = vmatpush.msra.mxu0 0.0
  %1583 = vmatpush.msra.mxu0 0.0
  %1584 = vmatpush.msra.mxu0 0.0
  %1585 = vmatpush.msra.mxu0 0.0
  %1586 = vmatpush.msra.mxu0 0.0
  %1587 = vmatpush.msra.mxu0 0.0
  %1588 = vmatpush.msra.mxu0 0.0
  %1589 = vmatpush.msra.mxu0 0.0
  %1590 = vmatpush.msra.mxu0 0.0
  %1591 = vmatpush.msra.mxu0 0.0
  %1592 = vmatpush.msra.mxu0 0.0
  %1593 = vmatpush.msra.mxu0 %v1552
  %1594 = vmatmul.f32.gmra.mxu0 %v1556
  %v1595 = vpop.f32.mrf.mxu0
  %v1596 = vadd.f32 0.0, %v1595
  %1597 = vdwg.mxu0
  %v1598 = vadd.f32 %v1543, %v1576
  %v1599 = vadd.f32 %v1544, %v1596
  %1600 = vrot.lane.b32.xlu0 %v1281, 113
  %v1601 = vpop.permute.xlu0 %1600
  %1602 = vrot.lane.b32.xlu0 %v1282, 113
  %v1603 = vpop.permute.xlu0 %1602
  %v1604 = vsel %vm394, %v1601, %v1603
  %v1605 = vsel %vm394, %v1603, %v1601
  %v1606 = vmul.f32 %v1604, %v400
  %v1607 = vmul.f32 %v1605, %v401
  %s1608 = scalar_lea.vmem %s6, 48
  %v1609 = vld [vmem:[%s1608] sm:$0xff]
  %v1611 = vsel %vm67, %v1609, 0
  %1613 = vmatpush.msra.mxu0 0.0
  %1614 = vmatpush.msra.mxu0 0.0
  %1615 = vmatpush.msra.mxu0 0.0
  %1616 = vmatpush.msra.mxu0 0.0
  %1617 = vmatpush.msra.mxu0 0.0
  %1618 = vmatpush.msra.mxu0 0.0
  %1619 = vmatpush.msra.mxu0 0.0
  %1620 = vmatpush.msra.mxu0 0.0
  %1621 = vmatpush.msra.mxu0 0.0
  %1622 = vmatpush.msra.mxu0 0.0
  %1623 = vmatpush.msra.mxu0 0.0
  %1624 = vmatpush.msra.mxu0 0.0
  %1625 = vmatpush.msra.mxu0 0.0
  %1626 = vmatpush.msra.mxu0 0.0
  %1627 = vmatpush.msra.mxu0 0.0
  %1628 = vmatpush.msra.mxu0 %v1606
  %1629 = vmatmul.f32.gmra.mxu0 %v1611
  %v1630 = vpop.f32.mrf.mxu0
  %v1631 = vadd.f32 0.0, %v1630
  %1632 = vdwg.mxu0
  %1633 = vmatpush.msra.mxu0 0.0
  %1634 = vmatpush.msra.mxu0 0.0
  %1635 = vmatpush.msra.mxu0 0.0
  %1636 = vmatpush.msra.mxu0 0.0
  %1637 = vmatpush.msra.mxu0 0.0
  %1638 = vmatpush.msra.mxu0 0.0
  %1639 = vmatpush.msra.mxu0 0.0
  %1640 = vmatpush.msra.mxu0 0.0
  %1641 = vmatpush.msra.mxu0 0.0
  %1642 = vmatpush.msra.mxu0 0.0
  %1643 = vmatpush.msra.mxu0 0.0
  %1644 = vmatpush.msra.mxu0 0.0
  %1645 = vmatpush.msra.mxu0 0.0
  %1646 = vmatpush.msra.mxu0 0.0
  %1647 = vmatpush.msra.mxu0 0.0
  %1648 = vmatpush.msra.mxu0 %v1607
  %1649 = vmatmul.f32.gmra.mxu0 %v1611
  %v1650 = vpop.f32.mrf.mxu0
  %v1651 = vadd.f32 0.0, %v1650
  %1652 = vdwg.mxu0
  %v1653 = vadd.f32 %v1598, %v1631
  %v1654 = vadd.f32 %v1599, %v1651
  %1655 = vrot.lane.b32.xlu0 %v1281, 112
  %v1656 = vpop.permute.xlu0 %1655
  %1657 = vrot.lane.b32.xlu0 %v1282, 112
  %v1658 = vpop.permute.xlu0 %1657
  %v1659 = vsel %vm457, %v1656, %v1658
  %v1660 = vsel %vm457, %v1658, %v1656
  %v1661 = vmul.f32 %v1659, %v463
  %v1662 = vmul.f32 %v1660, %v464
  %s1663 = scalar_lea.vmem %s6, 56
  %v1664 = vld [vmem:[%s1663] sm:$0xff]
  %v1666 = vsel %vm67, %v1664, 0
  %1668 = vmatpush.msra.mxu0 0.0
  %1669 = vmatpush.msra.mxu0 0.0
  %1670 = vmatpush.msra.mxu0 0.0
  %1671 = vmatpush.msra.mxu0 0.0
  %1672 = vmatpush.msra.mxu0 0.0
  %1673 = vmatpush.msra.mxu0 0.0
  %1674 = vmatpush.msra.mxu0 0.0
  %1675 = vmatpush.msra.mxu0 0.0
  %1676 = vmatpush.msra.mxu0 0.0
  %1677 = vmatpush.msra.mxu0 0.0
  %1678 = vmatpush.msra.mxu0 0.0
  %1679 = vmatpush.msra.mxu0 0.0
  %1680 = vmatpush.msra.mxu0 0.0
  %1681 = vmatpush.msra.mxu0 0.0
  %1682 = vmatpush.msra.mxu0 0.0
  %1683 = vmatpush.msra.mxu0 %v1661
  %1684 = vmatmul.f32.gmra.mxu0 %v1666
  %v1685 = vpop.f32.mrf.mxu0
  %v1686 = vadd.f32 0.0, %v1685
  %1687 = vdwg.mxu0
  %1688 = vmatpush.msra.mxu0 0.0
  %1689 = vmatpush.msra.mxu0 0.0
  %1690 = vmatpush.msra.mxu0 0.0
  %1691 = vmatpush.msra.mxu0 0.0
  %1692 = vmatpush.msra.mxu0 0.0
  %1693 = vmatpush.msra.mxu0 0.0
  %1694 = vmatpush.msra.mxu0 0.0
  %1695 = vmatpush.msra.mxu0 0.0
  %1696 = vmatpush.msra.mxu0 0.0
  %1697 = vmatpush.msra.mxu0 0.0
  %1698 = vmatpush.msra.mxu0 0.0
  %1699 = vmatpush.msra.mxu0 0.0
  %1700 = vmatpush.msra.mxu0 0.0
  %1701 = vmatpush.msra.mxu0 0.0
  %1702 = vmatpush.msra.mxu0 0.0
  %1703 = vmatpush.msra.mxu0 %v1662
  %1704 = vmatmul.f32.gmra.mxu0 %v1666
  %v1705 = vpop.f32.mrf.mxu0
  %v1706 = vadd.f32 0.0, %v1705
  %1707 = vdwg.mxu0
  %v1708 = vadd.f32 %v1653, %v1686
  %v1709 = vadd.f32 %v1654, %v1706
  %1710 = vrot.lane.b32.xlu0 %v1281, 111
  %v1711 = vpop.permute.xlu0 %1710
  %1712 = vrot.lane.b32.xlu0 %v1282, 111
  %v1713 = vpop.permute.xlu0 %1712
  %v1714 = vsel %vm520, %v1711, %v1713
  %v1715 = vsel %vm520, %v1713, %v1711
  %v1716 = vmul.f32 %v1714, %v526
  %v1717 = vmul.f32 %v1715, %v527
  %s1718 = scalar_lea.vmem %s6, 64
  %v1719 = vld [vmem:[%s1718] sm:$0xff]
  %v1721 = vsel %vm67, %v1719, 0
  %1723 = vmatpush.msra.mxu0 0.0
  %1724 = vmatpush.msra.mxu0 0.0
  %1725 = vmatpush.msra.mxu0 0.0
  %1726 = vmatpush.msra.mxu0 0.0
  %1727 = vmatpush.msra.mxu0 0.0
  %1728 = vmatpush.msra.mxu0 0.0
  %1729 = vmatpush.msra.mxu0 0.0
  %1730 = vmatpush.msra.mxu0 0.0
  %1731 = vmatpush.msra.mxu0 0.0
  %1732 = vmatpush.msra.mxu0 0.0
  %1733 = vmatpush.msra.mxu0 0.0
  %1734 = vmatpush.msra.mxu0 0.0
  %1735 = vmatpush.msra.mxu0 0.0
  %1736 = vmatpush.msra.mxu0 0.0
  %1737 = vmatpush.msra.mxu0 0.0
  %1738 = vmatpush.msra.mxu0 %v1716
  %1739 = vmatmul.f32.gmra.mxu0 %v1721
  %v1740 = vpop.f32.mrf.mxu0
  %v1741 = vadd.f32 0.0, %v1740
  %1742 = vdwg.mxu0
  %1743 = vmatpush.msra.mxu0 0.0
  %1744 = vmatpush.msra.mxu0 0.0
  %1745 = vmatpush.msra.mxu0 0.0
  %1746 = vmatpush.msra.mxu0 0.0
  %1747 = vmatpush.msra.mxu0 0.0
  %1748 = vmatpush.msra.mxu0 0.0
  %1749 = vmatpush.msra.mxu0 0.0
  %1750 = vmatpush.msra.mxu0 0.0
  %1751 = vmatpush.msra.mxu0 0.0
  %1752 = vmatpush.msra.mxu0 0.0
  %1753 = vmatpush.msra.mxu0 0.0
  %1754 = vmatpush.msra.mxu0 0.0
  %1755 = vmatpush.msra.mxu0 0.0
  %1756 = vmatpush.msra.mxu0 0.0
  %1757 = vmatpush.msra.mxu0 0.0
  %1758 = vmatpush.msra.mxu0 %v1717
  %1759 = vmatmul.f32.gmra.mxu0 %v1721
  %v1760 = vpop.f32.mrf.mxu0
  %v1761 = vadd.f32 0.0, %v1760
  %1762 = vdwg.mxu0
  %v1763 = vadd.f32 %v1708, %v1741
  %v1764 = vadd.f32 %v1709, %v1761
  %v1765 = vld [vmem:[%s7] sm:$0xff]
  %1767 = vset.pattern.permute.xlu0 0
  %1768 = vperm.xlu0 %1767, %v1765
  %v1769 = vpop.permute.xlu0 %1768
  %v1771 = vadd.f32 %v1763, %v1769
  %v1772 = vadd.f32 %v1764, %v1769
  %1773 = vst [vmem:[%s8] sm:$0xff] %v1771
  %1774 = vst [vmem:[%s8 + $0x8] sm:$0xff] %v1772
  // Predicated region
  $region34: #{quantiseze_forward.1} parent=0 // pred_check
    _
  $region35: #{quantiseze_forward.1} parent=0 // pred_check_branch
    %1776 = sbr.rel (0) target = $region37
  $region36: #{quantiseze_forward.1} parent=0 // pred_region
    _
  $region37: #{quantiseze_forward.1} parent=0 // pred_fallthru
    _
  // Predicated region
  $region38: #{quantiseze_forward.1} parent=0 // pred_check
    _
  $region39: #{quantiseze_forward.1} parent=0 // pred_check_branch
    %1778 = sbr.rel (0) target = $region41
  $region40: #{quantiseze_forward.1} parent=0 // pred_region
    _
  $region41: #{quantiseze_forward.1} parent=0 // pred_fallthru
    _

</llo_original>
